<compile_context>
chip_gen: v5e
topology: v5e:2x2
jax: 0.10.0
libtpu: 0.0.40
codegen_flags: <defaults>
</compile_context>

<pallas_src>
import functools

import jax
import jax.numpy as jnp
from jax import lax
from jax.experimental import pallas as pl
from jax.experimental.pallas import tpu as pltpu


def gat_fused_kernel(hd_ref, hs_ref, wz_ref, vr_ref, vl_ref, bias_ref, out_ref,
                     *, num_heads, out_feats):
    """One dst-row tile: fused fc + attention + softmax + aggregate, all heads."""
    H, F = num_heads, out_feats

    x_dst = hd_ref[...]                    # (T, Din)  dst-tile node features
    x_src = hs_ref[...]                    # (N, Din)  all src node features (resident)

    # Src projection for all heads (head-major along lanes): (N, H*F).
    z_src = jnp.dot(x_src, wz_ref[...], preferred_element_type=jnp.float32)

    # Dst attention term er[t, h] = z_dst[t, h, :] . attn_r[h]  == x_dst . v_r.
    er_d = jnp.dot(x_dst, vr_ref[...], preferred_element_type=jnp.float32)   # (T, H)

    # Src attention term directly in (head, src) layout: el_t[h, j] = x_src[j].v_l[h].
    el_t = lax.dot_general(vl_ref[...], x_src, (((1,), (1,)), ((), ())),
                           preferred_element_type=jnp.float32)               # (H, N)

    # Additive mask: 0 on edges (src -> dst), ~-1e30 otherwise (streamed as bf16).
    bias = bias_ref[...].astype(jnp.float32)                                 # (T, N)

    for hd in range(H):                    # static unroll over the small head dim
        z_h = z_src[:, hd * F:(hd + 1) * F]                                   # (N, F)

        e = er_d[:, hd:hd + 1] + el_t[hd:hd + 1, :]                           # (T, N)
        e = jnp.maximum(e, 0.2 * e)                                           # leaky_relu(0.2)
        e = e + bias

        m = jnp.max(e, axis=-1, keepdims=True)                                # per-dst row max
        p = jnp.exp(e - m)                                                    # non-edges -> exactly 0
        denom = jnp.sum(p, axis=-1, keepdims=True)                            # (T, 1)

        # Aggregate with unnormalized weights on the MXU, normalize afterwards.
        agg = jnp.dot(p, z_h, preferred_element_type=jnp.float32)             # (T, F)
        out_h = agg * (1.0 / jnp.maximum(denom, 1e-20))                       # guard empty mailbox

        # ELU activation.
        out_h = jnp.where(out_h > 0.0, out_h,
                          jnp.exp(jnp.minimum(out_h, 0.0)) - 1.0)

        out_ref[:, hd * F:(hd + 1) * F] = out_h                               # static lane slice


def _choose_dst_tile(N, Din, HF, H):
    """Largest dst-row tile (divides N, multiple of 8) fitting a ~36 MiB VMEM budget."""
    f32 = 4
    # Resident: full src features, weights, plus per-tile full-src intermediates.
    resident = f32 * (N * Din + Din * HF + Din * H + H * Din + N * HF + H * N)
    budget = 36 * 1024 * 1024
    for t in (2048, 1024, 512, 256, 128, 64, 32, 16, 8):
        if t > N or N % t != 0:
            continue
        streamed = 2 * (t * N * 2          # bias tile (bf16), double-buffered
                        + t * Din * f32    # dst feature tile
                        + t * HF * f32)    # output tile
        live = 3 * t * N * f32             # e / p / broadcast intermediates per head
        if resident + streamed + live <= budget:
            return t
    # TODO(synk): pad N (cdiv grid) for sizes with no suitable divisor.
    return N


def gat_forward(h, w, attn_l, attn_r, adj):
    """h: (N, Din), w: (H, F, Din), attn_*: (H, F), adj: (N, N) -> (N, H, F)."""
    N, Din = h.shape
    H, F, _ = w.shape
    HF = H * F

    # fc weight for all heads, plus the attention projections folded so that
    # z.attn_r == h.v_r and z.attn_l == h.v_l (saves per-head slivers in-kernel).
    w_z = jnp.transpose(w.reshape(HF, Din))                       # (Din, HF)
    v_r = jnp.transpose(jnp.einsum('hf,hfd->hd', attn_r, w))      # (Din, H)
    v_l = jnp.einsum('hf,hfd->hd', attn_l, w)                     # (H, Din)

    # Additive attention-mask bias, streamed in bf16 to halve the O(N^2) DMA.
    bias = jnp.where(adj > 0.0, 0.0, -1e30).astype(jnp.bfloat16)  # (N, N)

    T = _choose_dst_tile(N, Din, HF, H)
    grid = (N // T,)

    kernel = functools.partial(gat_fused_kernel, num_heads=H, out_feats=F)
    out = pl.pallas_call(
        kernel,
        out_shape=jax.ShapeDtypeStruct((N, HF), jnp.float32),
        grid_spec=pltpu.PrefetchScalarGridSpec(
            num_scalar_prefetch=0,
            grid=grid,
            in_specs=[
                pl.BlockSpec((T, Din), lambda i: (i, 0)),      # dst feature tile (streamed)
                pl.BlockSpec((N, Din), lambda i: (0, 0)),      # full src features (resident)
                pl.BlockSpec((Din, HF), lambda i: (0, 0)),     # fc weight (resident)
                pl.BlockSpec((Din, H), lambda i: (0, 0)),      # folded attn_r (resident)
                pl.BlockSpec((H, Din), lambda i: (0, 0)),      # folded attn_l (resident)
                pl.BlockSpec((T, N), lambda i: (i, 0)),        # bf16 mask bias (streamed)
            ],
            out_specs=pl.BlockSpec((T, HF), lambda i: (i, 0)),
        ),
        compiler_params=pltpu.CompilerParams(
            dimension_semantics=("parallel",),                  # megacore on v7x
            vmem_limit_bytes=48 * 1024 * 1024),
    )(h, h, w_z, v_r, v_l, bias)

    # Heads are packed along lanes as [h0:f0..f7 | h1:f0..f7 | ...] -> (N, H, F).
    return out.reshape(N, H, F)


def gat_ref(h, w, attn_l, attn_r, adj):
    """Pure-JAX reference for correctness checking."""
    z = jnp.einsum('nd,hfd->nhf', h, w)                      # (N, H, F)
    el = jnp.einsum('nhf,hf->nh', z, attn_l)                 # src term
    er = jnp.einsum('nhf,hf->nh', z, attn_r)                 # dst term
    e = er[:, None, :] + el[None, :, :]                      # (dst, src, H)
    e = jnp.where(e >= 0.0, e, 0.2 * e)
    mask = adj[:, :, None] > 0.0
    e = jnp.where(mask, e, -1e30)
    e = e - jnp.max(e, axis=1, keepdims=True)
    p = jnp.where(mask, jnp.exp(e), 0.0)
    alpha = p / jnp.sum(p, axis=1, keepdims=True)            # (dst, src, H)
    out = jnp.einsum('ijh,jhf->ihf', alpha, z)               # (N, H, F)
    return jnp.where(out > 0.0, out, jnp.exp(jnp.minimum(out, 0.0)) - 1.0)


if __name__ == "__main__":
    # Small, module-consistent shapes: N nodes, in_feats, num_heads, out_feats.
    N, IN_FEATS, NUM_HEADS, OUT_FEATS = 16, 32, 8, 8

    key = jax.random.PRNGKey(0)
    k1, k2, k3, k4, k5 = jax.random.split(key, 5)

    # Deterministic synthetic parameters (shapes from GATLayer.__init__):
    #   fc.weight: (out_feats*num_heads, in_feats) -> reshaped (H, F, in_feats)
    #   attn_l / attn_r: (1, num_heads, out_feats) -> squeezed to (H, F)
    h = jax.random.normal(k1, (N, IN_FEATS), dtype=jnp.float32)
    w = jax.random.normal(k2, (NUM_HEADS, OUT_FEATS, IN_FEATS),
                          dtype=jnp.float32) * 0.1
    attn_l = jax.random.normal(k3, (NUM_HEADS, OUT_FEATS), dtype=jnp.float32) * 0.1
    attn_r = jax.random.normal(k4, (NUM_HEADS, OUT_FEATS), dtype=jnp.float32) * 0.1

    # Deterministic synthetic graph: random directed edges + self-loops
    # (self-loops guarantee every destination has a non-empty mailbox).
    adj = (jax.random.uniform(k5, (N, N)) < 0.3).astype(jnp.float32)
    adj = jnp.maximum(adj, jnp.eye(N, dtype=jnp.float32))

    out = gat_forward(h, w, attn_l, attn_r, adj)
    out = jax.block_until_ready(out)

    ref = gat_ref(h, w, attn_l, attn_r, adj)
    assert out.shape == (N, NUM_HEADS, OUT_FEATS), out.shape
    assert jnp.allclose(out, ref, rtol=1e-4, atol=1e-4), \
        float(jnp.max(jnp.abs(out - ref)))

    print("KERNEL_OK")
</pallas_src>

<mosaic_0001>
module attributes {stable_mosaic.version = 11 : i64} {
  func.func @gat_fused_kernel(%arg0: i32, %arg1: memref<16x32xf32, #tpu.memory_space<vmem>>, %arg2: memref<16x32xf32, #tpu.memory_space<vmem>>, %arg3: memref<32x64xf32, #tpu.memory_space<vmem>>, %arg4: memref<32x8xf32, #tpu.memory_space<vmem>>, %arg5: memref<8x32xf32, #tpu.memory_space<vmem>>, %arg6: memref<16x16xbf16, #tpu.memory_space<vmem>>, %arg7: memref<16x64xf32, #tpu.memory_space<vmem>>) attributes {dimension_semantics = [#tpu.dimension_semantics<parallel>], iteration_bounds = array<i64: 1>, scalar_prefetch = 0 : i64, scratch_operands = 0 : i64, tpu.core_type = #tpu.core_type<tc>, window_params = [{transform_indices = @transform_0, window_bounds = array<i64: 16, 32>}, {pipeline_mode = #tpu.pipeline_mode<synchronous>, transform_indices = @transform_1, window_bounds = array<i64: 16, 32>}, {pipeline_mode = #tpu.pipeline_mode<synchronous>, transform_indices = @transform_2, window_bounds = array<i64: 32, 64>}, {pipeline_mode = #tpu.pipeline_mode<synchronous>, transform_indices = @transform_3, window_bounds = array<i64: 32, 8>}, {pipeline_mode = #tpu.pipeline_mode<synchronous>, transform_indices = @transform_4, window_bounds = array<i64: 8, 32>}, {transform_indices = @transform_5, window_bounds = array<i64: 16, 16>}, {transform_indices = @transform_6, window_bounds = array<i64: 16, 64>}]} {
    %c0 = arith.constant 0 : index
    %c0_0 = arith.constant 0 : index
    %0 = vector.load %arg1[%c0, %c0_0] : memref<16x32xf32, #tpu.memory_space<vmem>>, vector<16x32xf32>
    %c0_1 = arith.constant 0 : index
    %c0_2 = arith.constant 0 : index
    %1 = vector.load %arg2[%c0_1, %c0_2] : memref<16x32xf32, #tpu.memory_space<vmem>>, vector<16x32xf32>
    %c0_3 = arith.constant 0 : index
    %c0_4 = arith.constant 0 : index
    %2 = vector.load %arg3[%c0_3, %c0_4] : memref<32x64xf32, #tpu.memory_space<vmem>>, vector<32x64xf32>
    %cst = arith.constant dense<0.000000e+00> : vector<16x64xf32>
    %3 = tpu.matmul %1, %2, %cst {dimension_numbers = #tpu.dot_dimension_numbers<[1], [0], [0], [1], [0, 0, 1, 1], [], []>} : vector<16x32xf32>, vector<32x64xf32>, vector<16x64xf32> -> vector<16x64xf32>
    %c0_5 = arith.constant 0 : index
    %c0_6 = arith.constant 0 : index
    %4 = vector.load %arg4[%c0_5, %c0_6] : memref<32x8xf32, #tpu.memory_space<vmem>>, vector<32x8xf32>
    %cst_7 = arith.constant dense<0.000000e+00> : vector<16x8xf32>
    %5 = tpu.matmul %0, %4, %cst_7 {dimension_numbers = #tpu.dot_dimension_numbers<[1], [0], [0], [1], [0, 0, 1, 1], [], []>} : vector<16x32xf32>, vector<32x8xf32>, vector<16x8xf32> -> vector<16x8xf32>
    %c0_8 = arith.constant 0 : index
    %c0_9 = arith.constant 0 : index
    %6 = vector.load %arg5[%c0_8, %c0_9] : memref<8x32xf32, #tpu.memory_space<vmem>>, vector<8x32xf32>
    %cst_10 = arith.constant dense<0.000000e+00> : vector<8x16xf32>
    %7 = tpu.matmul %6, %1, %cst_10 {dimension_numbers = #tpu.dot_dimension_numbers<[1], [1], [0], [0], [0, 0, 1, 0], [], []>} : vector<8x32xf32>, vector<16x32xf32>, vector<8x16xf32> -> vector<8x16xf32>
    %c0_11 = arith.constant 0 : index
    %c0_12 = arith.constant 0 : index
    %8 = vector.load %arg6[%c0_11, %c0_12] : memref<16x16xbf16, #tpu.memory_space<vmem>>, vector<16x16xbf16>
    %9 = arith.extf %8 : vector<16x16xbf16> to vector<16x16xf32>
    %10 = vector.extract_strided_slice %3 {offsets = [0, 0], sizes = [16, 8], strides = [1, 1]} : vector<16x64xf32> to vector<16x8xf32>
    %11 = vector.extract_strided_slice %5 {offsets = [0, 0], sizes = [16, 1], strides = [1, 1]} : vector<16x8xf32> to vector<16x1xf32>
    %12 = vector.extract_strided_slice %7 {offsets = [0, 0], sizes = [1, 16], strides = [1, 1]} : vector<8x16xf32> to vector<1x16xf32>
    %13 = vector.broadcast %11 : vector<16x1xf32> to vector<16x16xf32>
    %14 = vector.broadcast %12 : vector<1x16xf32> to vector<16x16xf32>
    %15 = arith.addf %13, %14 : vector<16x16xf32>
    %cst_13 = arith.constant 2.000000e-01 : f32
    %16 = vector.broadcast %cst_13 : f32 to vector<16x16xf32>
    %17 = arith.mulf %16, %15 : vector<16x16xf32>
    %18 = arith.maximumf %15, %17 : vector<16x16xf32>
    %19 = arith.addf %18, %9 : vector<16x16xf32>
    %cst_14 = arith.constant dense<0xFF800000> : vector<16xf32>
    %20 = vector.multi_reduction <maximumf>, %19, %cst_14 [1] : vector<16x16xf32> to vector<16xf32>
    %21 = vector.shape_cast %20 : vector<16xf32> to vector<16x1xf32>
    %22 = vector.broadcast %21 : vector<16x1xf32> to vector<16x16xf32>
    %23 = arith.subf %19, %22 : vector<16x16xf32>
    %24 = math.exp %23 : vector<16x16xf32>
    %cst_15 = arith.constant dense<0.000000e+00> : vector<16xf32>
    %25 = vector.multi_reduction <add>, %24, %cst_15 [1] : vector<16x16xf32> to vector<16xf32>
    %26 = vector.shape_cast %25 : vector<16xf32> to vector<16x1xf32>
    %cst_16 = arith.constant dense<0.000000e+00> : vector<16x8xf32>
    %27 = tpu.matmul %24, %10, %cst_16 {dimension_numbers = #tpu.dot_dimension_numbers<[1], [0], [0], [1], [0, 0, 1, 1], [], []>} : vector<16x16xf32>, vector<16x8xf32>, vector<16x8xf32> -> vector<16x8xf32>
    %cst_17 = arith.constant 9.99999968E-21 : f32
    %28 = vector.broadcast %cst_17 : f32 to vector<16x1xf32>
    %29 = arith.maximumf %26, %28 : vector<16x1xf32>
    %cst_18 = arith.constant 1.000000e+00 : f32
    %30 = vector.broadcast %cst_18 : f32 to vector<16x1xf32>
    %31 = arith.divf %30, %29 : vector<16x1xf32>
    %32 = vector.broadcast %31 : vector<16x1xf32> to vector<16x8xf32>
    %33 = arith.mulf %27, %32 : vector<16x8xf32>
    %cst_19 = arith.constant 0.000000e+00 : f32
    %34 = vector.broadcast %cst_19 : f32 to vector<16x8xf32>
    %35 = arith.cmpf ogt, %33, %34 : vector<16x8xf32>
    %cst_20 = arith.constant 0.000000e+00 : f32
    %36 = vector.broadcast %cst_20 : f32 to vector<16x8xf32>
    %37 = arith.minimumf %33, %36 : vector<16x8xf32>
    %38 = math.exp %37 : vector<16x8xf32>
    %cst_21 = arith.constant 1.000000e+00 : f32
    %39 = vector.broadcast %cst_21 : f32 to vector<16x8xf32>
    %40 = arith.subf %38, %39 : vector<16x8xf32>
    %41 = arith.select %35, %33, %40 : vector<16x8xi1>, vector<16x8xf32>
    %c0_22 = arith.constant 0 : index
    %c0_23 = arith.constant 0 : index
    %42 = vector.load %arg7[%c0_22, %c0_23] : memref<16x64xf32, #tpu.memory_space<vmem>>, vector<16x8xf32>
    tpu.vector_store %arg7[%c0_22, %c0_23], %41 {strides = array<i32>} : memref<16x64xf32, #tpu.memory_space<vmem>>, vector<16x8xf32>,
    %43 = vector.extract_strided_slice %3 {offsets = [0, 8], sizes = [16, 8], strides = [1, 1]} : vector<16x64xf32> to vector<16x8xf32>
    %44 = vector.extract_strided_slice %5 {offsets = [0, 1], sizes = [16, 1], strides = [1, 1]} : vector<16x8xf32> to vector<16x1xf32>
    %45 = vector.extract_strided_slice %7 {offsets = [1, 0], sizes = [1, 16], strides = [1, 1]} : vector<8x16xf32> to vector<1x16xf32>
    %46 = vector.broadcast %44 : vector<16x1xf32> to vector<16x16xf32>
    %47 = vector.broadcast %45 : vector<1x16xf32> to vector<16x16xf32>
    %48 = arith.addf %46, %47 : vector<16x16xf32>
    %cst_24 = arith.constant 2.000000e-01 : f32
    %49 = vector.broadcast %cst_24 : f32 to vector<16x16xf32>
    %50 = arith.mulf %49, %48 : vector<16x16xf32>
    %51 = arith.maximumf %48, %50 : vector<16x16xf32>
    %52 = arith.addf %51, %9 : vector<16x16xf32>
    %cst_25 = arith.constant dense<0xFF800000> : vector<16xf32>
    %53 = vector.multi_reduction <maximumf>, %52, %cst_25 [1] : vector<16x16xf32> to vector<16xf32>
    %54 = vector.shape_cast %53 : vector<16xf32> to vector<16x1xf32>
    %55 = vector.broadcast %54 : vector<16x1xf32> to vector<16x16xf32>
    %56 = arith.subf %52, %55 : vector<16x16xf32>
    %57 = math.exp %56 : vector<16x16xf32>
    %cst_26 = arith.constant dense<0.000000e+00> : vector<16xf32>
    %58 = vector.multi_reduction <add>, %57, %cst_26 [1] : vector<16x16xf32> to vector<16xf32>
    %59 = vector.shape_cast %58 : vector<16xf32> to vector<16x1xf32>
    %cst_27 = arith.constant dense<0.000000e+00> : vector<16x8xf32>
    %60 = tpu.matmul %57, %43, %cst_27 {dimension_numbers = #tpu.dot_dimension_numbers<[1], [0], [0], [1], [0, 0, 1, 1], [], []>} : vector<16x16xf32>, vector<16x8xf32>, vector<16x8xf32> -> vector<16x8xf32>
    %cst_28 = arith.constant 9.99999968E-21 : f32
    %61 = vector.broadcast %cst_28 : f32 to vector<16x1xf32>
    %62 = arith.maximumf %59, %61 : vector<16x1xf32>
    %cst_29 = arith.constant 1.000000e+00 : f32
    %63 = vector.broadcast %cst_29 : f32 to vector<16x1xf32>
    %64 = arith.divf %63, %62 : vector<16x1xf32>
    %65 = vector.broadcast %64 : vector<16x1xf32> to vector<16x8xf32>
    %66 = arith.mulf %60, %65 : vector<16x8xf32>
    %cst_30 = arith.constant 0.000000e+00 : f32
    %67 = vector.broadcast %cst_30 : f32 to vector<16x8xf32>
    %68 = arith.cmpf ogt, %66, %67 : vector<16x8xf32>
    %cst_31 = arith.constant 0.000000e+00 : f32
    %69 = vector.broadcast %cst_31 : f32 to vector<16x8xf32>
    %70 = arith.minimumf %66, %69 : vector<16x8xf32>
    %71 = math.exp %70 : vector<16x8xf32>
    %cst_32 = arith.constant 1.000000e+00 : f32
    %72 = vector.broadcast %cst_32 : f32 to vector<16x8xf32>
    %73 = arith.subf %71, %72 : vector<16x8xf32>
    %74 = arith.select %68, %66, %73 : vector<16x8xi1>, vector<16x8xf32>
    %c0_33 = arith.constant 0 : index
    %c8 = arith.constant 8 : index
    %75 = vector.load %arg7[%c0_33, %c8] : memref<16x64xf32, #tpu.memory_space<vmem>>, vector<16x8xf32>
    tpu.vector_store %arg7[%c0_33, %c8], %74 {strides = array<i32>} : memref<16x64xf32, #tpu.memory_space<vmem>>, vector<16x8xf32>,
    %76 = vector.extract_strided_slice %3 {offsets = [0, 16], sizes = [16, 8], strides = [1, 1]} : vector<16x64xf32> to vector<16x8xf32>
    %77 = vector.extract_strided_slice %5 {offsets = [0, 2], sizes = [16, 1], strides = [1, 1]} : vector<16x8xf32> to vector<16x1xf32>
    %78 = vector.extract_strided_slice %7 {offsets = [2, 0], sizes = [1, 16], strides = [1, 1]} : vector<8x16xf32> to vector<1x16xf32>
    %79 = vector.broadcast %77 : vector<16x1xf32> to vector<16x16xf32>
    %80 = vector.broadcast %78 : vector<1x16xf32> to vector<16x16xf32>
    %81 = arith.addf %79, %80 : vector<16x16xf32>
    %cst_34 = arith.constant 2.000000e-01 : f32
    %82 = vector.broadcast %cst_34 : f32 to vector<16x16xf32>
    %83 = arith.mulf %82, %81 : vector<16x16xf32>
    %84 = arith.maximumf %81, %83 : vector<16x16xf32>
    %85 = arith.addf %84, %9 : vector<16x16xf32>
    %cst_35 = arith.constant dense<0xFF800000> : vector<16xf32>
    %86 = vector.multi_reduction <maximumf>, %85, %cst_35 [1] : vector<16x16xf32> to vector<16xf32>
    %87 = vector.shape_cast %86 : vector<16xf32> to vector<16x1xf32>
    %88 = vector.broadcast %87 : vector<16x1xf32> to vector<16x16xf32>
    %89 = arith.subf %85, %88 : vector<16x16xf32>
    %90 = math.exp %89 : vector<16x16xf32>
    %cst_36 = arith.constant dense<0.000000e+00> : vector<16xf32>
    %91 = vector.multi_reduction <add>, %90, %cst_36 [1] : vector<16x16xf32> to vector<16xf32>
    %92 = vector.shape_cast %91 : vector<16xf32> to vector<16x1xf32>
    %cst_37 = arith.constant dense<0.000000e+00> : vector<16x8xf32>
    %93 = tpu.matmul %90, %76, %cst_37 {dimension_numbers = #tpu.dot_dimension_numbers<[1], [0], [0], [1], [0, 0, 1, 1], [], []>} : vector<16x16xf32>, vector<16x8xf32>, vector<16x8xf32> -> vector<16x8xf32>
    %cst_38 = arith.constant 9.99999968E-21 : f32
    %94 = vector.broadcast %cst_38 : f32 to vector<16x1xf32>
    %95 = arith.maximumf %92, %94 : vector<16x1xf32>
    %cst_39 = arith.constant 1.000000e+00 : f32
    %96 = vector.broadcast %cst_39 : f32 to vector<16x1xf32>
    %97 = arith.divf %96, %95 : vector<16x1xf32>
    %98 = vector.broadcast %97 : vector<16x1xf32> to vector<16x8xf32>
    %99 = arith.mulf %93, %98 : vector<16x8xf32>
    %cst_40 = arith.constant 0.000000e+00 : f32
    %100 = vector.broadcast %cst_40 : f32 to vector<16x8xf32>
    %101 = arith.cmpf ogt, %99, %100 : vector<16x8xf32>
    %cst_41 = arith.constant 0.000000e+00 : f32
    %102 = vector.broadcast %cst_41 : f32 to vector<16x8xf32>
    %103 = arith.minimumf %99, %102 : vector<16x8xf32>
    %104 = math.exp %103 : vector<16x8xf32>
    %cst_42 = arith.constant 1.000000e+00 : f32
    %105 = vector.broadcast %cst_42 : f32 to vector<16x8xf32>
    %106 = arith.subf %104, %105 : vector<16x8xf32>
    %107 = arith.select %101, %99, %106 : vector<16x8xi1>, vector<16x8xf32>
    %c0_43 = arith.constant 0 : index
    %c16 = arith.constant 16 : index
    %108 = vector.load %arg7[%c0_43, %c16] : memref<16x64xf32, #tpu.memory_space<vmem>>, vector<16x8xf32>
    tpu.vector_store %arg7[%c0_43, %c16], %107 {strides = array<i32>} : memref<16x64xf32, #tpu.memory_space<vmem>>, vector<16x8xf32>,
    %109 = vector.extract_strided_slice %3 {offsets = [0, 24], sizes = [16, 8], strides = [1, 1]} : vector<16x64xf32> to vector<16x8xf32>
    %110 = vector.extract_strided_slice %5 {offsets = [0, 3], sizes = [16, 1], strides = [1, 1]} : vector<16x8xf32> to vector<16x1xf32>
    %111 = vector.extract_strided_slice %7 {offsets = [3, 0], sizes = [1, 16], strides = [1, 1]} : vector<8x16xf32> to vector<1x16xf32>
    %112 = vector.broadcast %110 : vector<16x1xf32> to vector<16x16xf32>
    %113 = vector.broadcast %111 : vector<1x16xf32> to vector<16x16xf32>
    %114 = arith.addf %112, %113 : vector<16x16xf32>
    %cst_44 = arith.constant 2.000000e-01 : f32
    %115 = vector.broadcast %cst_44 : f32 to vector<16x16xf32>
    %116 = arith.mulf %115, %114 : vector<16x16xf32>
    %117 = arith.maximumf %114, %116 : vector<16x16xf32>
    %118 = arith.addf %117, %9 : vector<16x16xf32>
    %cst_45 = arith.constant dense<0xFF800000> : vector<16xf32>
    %119 = vector.multi_reduction <maximumf>, %118, %cst_45 [1] : vector<16x16xf32> to vector<16xf32>
    %120 = vector.shape_cast %119 : vector<16xf32> to vector<16x1xf32>
    %121 = vector.broadcast %120 : vector<16x1xf32> to vector<16x16xf32>
    %122 = arith.subf %118, %121 : vector<16x16xf32>
    %123 = math.exp %122 : vector<16x16xf32>
    %cst_46 = arith.constant dense<0.000000e+00> : vector<16xf32>
    %124 = vector.multi_reduction <add>, %123, %cst_46 [1] : vector<16x16xf32> to vector<16xf32>
    %125 = vector.shape_cast %124 : vector<16xf32> to vector<16x1xf32>
    %cst_47 = arith.constant dense<0.000000e+00> : vector<16x8xf32>
    %126 = tpu.matmul %123, %109, %cst_47 {dimension_numbers = #tpu.dot_dimension_numbers<[1], [0], [0], [1], [0, 0, 1, 1], [], []>} : vector<16x16xf32>, vector<16x8xf32>, vector<16x8xf32> -> vector<16x8xf32>
    %cst_48 = arith.constant 9.99999968E-21 : f32
    %127 = vector.broadcast %cst_48 : f32 to vector<16x1xf32>
    %128 = arith.maximumf %125, %127 : vector<16x1xf32>
    %cst_49 = arith.constant 1.000000e+00 : f32
    %129 = vector.broadcast %cst_49 : f32 to vector<16x1xf32>
    %130 = arith.divf %129, %128 : vector<16x1xf32>
    %131 = vector.broadcast %130 : vector<16x1xf32> to vector<16x8xf32>
    %132 = arith.mulf %126, %131 : vector<16x8xf32>
    %cst_50 = arith.constant 0.000000e+00 : f32
    %133 = vector.broadcast %cst_50 : f32 to vector<16x8xf32>
    %134 = arith.cmpf ogt, %132, %133 : vector<16x8xf32>
    %cst_51 = arith.constant 0.000000e+00 : f32
    %135 = vector.broadcast %cst_51 : f32 to vector<16x8xf32>
    %136 = arith.minimumf %132, %135 : vector<16x8xf32>
    %137 = math.exp %136 : vector<16x8xf32>
    %cst_52 = arith.constant 1.000000e+00 : f32
    %138 = vector.broadcast %cst_52 : f32 to vector<16x8xf32>
    %139 = arith.subf %137, %138 : vector<16x8xf32>
    %140 = arith.select %134, %132, %139 : vector<16x8xi1>, vector<16x8xf32>
    %c0_53 = arith.constant 0 : index
    %c24 = arith.constant 24 : index
    %141 = vector.load %arg7[%c0_53, %c24] : memref<16x64xf32, #tpu.memory_space<vmem>>, vector<16x8xf32>
    tpu.vector_store %arg7[%c0_53, %c24], %140 {strides = array<i32>} : memref<16x64xf32, #tpu.memory_space<vmem>>, vector<16x8xf32>,
    %142 = vector.extract_strided_slice %3 {offsets = [0, 32], sizes = [16, 8], strides = [1, 1]} : vector<16x64xf32> to vector<16x8xf32>
    %143 = vector.extract_strided_slice %5 {offsets = [0, 4], sizes = [16, 1], strides = [1, 1]} : vector<16x8xf32> to vector<16x1xf32>
    %144 = vector.extract_strided_slice %7 {offsets = [4, 0], sizes = [1, 16], strides = [1, 1]} : vector<8x16xf32> to vector<1x16xf32>
    %145 = vector.broadcast %143 : vector<16x1xf32> to vector<16x16xf32>
    %146 = vector.broadcast %144 : vector<1x16xf32> to vector<16x16xf32>
    %147 = arith.addf %145, %146 : vector<16x16xf32>
    %cst_54 = arith.constant 2.000000e-01 : f32
    %148 = vector.broadcast %cst_54 : f32 to vector<16x16xf32>
    %149 = arith.mulf %148, %147 : vector<16x16xf32>
    %150 = arith.maximumf %147, %149 : vector<16x16xf32>
    %151 = arith.addf %150, %9 : vector<16x16xf32>
    %cst_55 = arith.constant dense<0xFF800000> : vector<16xf32>
    %152 = vector.multi_reduction <maximumf>, %151, %cst_55 [1] : vector<16x16xf32> to vector<16xf32>
    %153 = vector.shape_cast %152 : vector<16xf32> to vector<16x1xf32>
    %154 = vector.broadcast %153 : vector<16x1xf32> to vector<16x16xf32>
    %155 = arith.subf %151, %154 : vector<16x16xf32>
    %156 = math.exp %155 : vector<16x16xf32>
    %cst_56 = arith.constant dense<0.000000e+00> : vector<16xf32>
    %157 = vector.multi_reduction <add>, %156, %cst_56 [1] : vector<16x16xf32> to vector<16xf32>
    %158 = vector.shape_cast %157 : vector<16xf32> to vector<16x1xf32>
    %cst_57 = arith.constant dense<0.000000e+00> : vector<16x8xf32>
    %159 = tpu.matmul %156, %142, %cst_57 {dimension_numbers = #tpu.dot_dimension_numbers<[1], [0], [0], [1], [0, 0, 1, 1], [], []>} : vector<16x16xf32>, vector<16x8xf32>, vector<16x8xf32> -> vector<16x8xf32>
    %cst_58 = arith.constant 9.99999968E-21 : f32
    %160 = vector.broadcast %cst_58 : f32 to vector<16x1xf32>
    %161 = arith.maximumf %158, %160 : vector<16x1xf32>
    %cst_59 = arith.constant 1.000000e+00 : f32
    %162 = vector.broadcast %cst_59 : f32 to vector<16x1xf32>
    %163 = arith.divf %162, %161 : vector<16x1xf32>
    %164 = vector.broadcast %163 : vector<16x1xf32> to vector<16x8xf32>
    %165 = arith.mulf %159, %164 : vector<16x8xf32>
    %cst_60 = arith.constant 0.000000e+00 : f32
    %166 = vector.broadcast %cst_60 : f32 to vector<16x8xf32>
    %167 = arith.cmpf ogt, %165, %166 : vector<16x8xf32>
    %cst_61 = arith.constant 0.000000e+00 : f32
    %168 = vector.broadcast %cst_61 : f32 to vector<16x8xf32>
    %169 = arith.minimumf %165, %168 : vector<16x8xf32>
    %170 = math.exp %169 : vector<16x8xf32>
    %cst_62 = arith.constant 1.000000e+00 : f32
    %171 = vector.broadcast %cst_62 : f32 to vector<16x8xf32>
    %172 = arith.subf %170, %171 : vector<16x8xf32>
    %173 = arith.select %167, %165, %172 : vector<16x8xi1>, vector<16x8xf32>
    %c0_63 = arith.constant 0 : index
    %c32 = arith.constant 32 : index
    %174 = vector.load %arg7[%c0_63, %c32] : memref<16x64xf32, #tpu.memory_space<vmem>>, vector<16x8xf32>
    tpu.vector_store %arg7[%c0_63, %c32], %173 {strides = array<i32>} : memref<16x64xf32, #tpu.memory_space<vmem>>, vector<16x8xf32>,
    %175 = vector.extract_strided_slice %3 {offsets = [0, 40], sizes = [16, 8], strides = [1, 1]} : vector<16x64xf32> to vector<16x8xf32>
    %176 = vector.extract_strided_slice %5 {offsets = [0, 5], sizes = [16, 1], strides = [1, 1]} : vector<16x8xf32> to vector<16x1xf32>
    %177 = vector.extract_strided_slice %7 {offsets = [5, 0], sizes = [1, 16], strides = [1, 1]} : vector<8x16xf32> to vector<1x16xf32>
    %178 = vector.broadcast %176 : vector<16x1xf32> to vector<16x16xf32>
    %179 = vector.broadcast %177 : vector<1x16xf32> to vector<16x16xf32>
    %180 = arith.addf %178, %179 : vector<16x16xf32>
    %cst_64 = arith.constant 2.000000e-01 : f32
    %181 = vector.broadcast %cst_64 : f32 to vector<16x16xf32>
    %182 = arith.mulf %181, %180 : vector<16x16xf32>
    %183 = arith.maximumf %180, %182 : vector<16x16xf32>
    %184 = arith.addf %183, %9 : vector<16x16xf32>
    %cst_65 = arith.constant dense<0xFF800000> : vector<16xf32>
    %185 = vector.multi_reduction <maximumf>, %184, %cst_65 [1] : vector<16x16xf32> to vector<16xf32>
    %186 = vector.shape_cast %185 : vector<16xf32> to vector<16x1xf32>
    %187 = vector.broadcast %186 : vector<16x1xf32> to vector<16x16xf32>
    %188 = arith.subf %184, %187 : vector<16x16xf32>
    %189 = math.exp %188 : vector<16x16xf32>
    %cst_66 = arith.constant dense<0.000000e+00> : vector<16xf32>
    %190 = vector.multi_reduction <add>, %189, %cst_66 [1] : vector<16x16xf32> to vector<16xf32>
    %191 = vector.shape_cast %190 : vector<16xf32> to vector<16x1xf32>
    %cst_67 = arith.constant dense<0.000000e+00> : vector<16x8xf32>
    %192 = tpu.matmul %189, %175, %cst_67 {dimension_numbers = #tpu.dot_dimension_numbers<[1], [0], [0], [1], [0, 0, 1, 1], [], []>} : vector<16x16xf32>, vector<16x8xf32>, vector<16x8xf32> -> vector<16x8xf32>
    %cst_68 = arith.constant 9.99999968E-21 : f32
    %193 = vector.broadcast %cst_68 : f32 to vector<16x1xf32>
    %194 = arith.maximumf %191, %193 : vector<16x1xf32>
    %cst_69 = arith.constant 1.000000e+00 : f32
    %195 = vector.broadcast %cst_69 : f32 to vector<16x1xf32>
    %196 = arith.divf %195, %194 : vector<16x1xf32>
    %197 = vector.broadcast %196 : vector<16x1xf32> to vector<16x8xf32>
    %198 = arith.mulf %192, %197 : vector<16x8xf32>
    %cst_70 = arith.constant 0.000000e+00 : f32
    %199 = vector.broadcast %cst_70 : f32 to vector<16x8xf32>
    %200 = arith.cmpf ogt, %198, %199 : vector<16x8xf32>
    %cst_71 = arith.constant 0.000000e+00 : f32
    %201 = vector.broadcast %cst_71 : f32 to vector<16x8xf32>
    %202 = arith.minimumf %198, %201 : vector<16x8xf32>
    %203 = math.exp %202 : vector<16x8xf32>
    %cst_72 = arith.constant 1.000000e+00 : f32
    %204 = vector.broadcast %cst_72 : f32 to vector<16x8xf32>
    %205 = arith.subf %203, %204 : vector<16x8xf32>
    %206 = arith.select %200, %198, %205 : vector<16x8xi1>, vector<16x8xf32>
    %c0_73 = arith.constant 0 : index
    %c40 = arith.constant 40 : index
    %207 = vector.load %arg7[%c0_73, %c40] : memref<16x64xf32, #tpu.memory_space<vmem>>, vector<16x8xf32>
    tpu.vector_store %arg7[%c0_73, %c40], %206 {strides = array<i32>} : memref<16x64xf32, #tpu.memory_space<vmem>>, vector<16x8xf32>,
    %208 = vector.extract_strided_slice %3 {offsets = [0, 48], sizes = [16, 8], strides = [1, 1]} : vector<16x64xf32> to vector<16x8xf32>
    %209 = vector.extract_strided_slice %5 {offsets = [0, 6], sizes = [16, 1], strides = [1, 1]} : vector<16x8xf32> to vector<16x1xf32>
    %210 = vector.extract_strided_slice %7 {offsets = [6, 0], sizes = [1, 16], strides = [1, 1]} : vector<8x16xf32> to vector<1x16xf32>
    %211 = vector.broadcast %209 : vector<16x1xf32> to vector<16x16xf32>
    %212 = vector.broadcast %210 : vector<1x16xf32> to vector<16x16xf32>
    %213 = arith.addf %211, %212 : vector<16x16xf32>
    %cst_74 = arith.constant 2.000000e-01 : f32
    %214 = vector.broadcast %cst_74 : f32 to vector<16x16xf32>
    %215 = arith.mulf %214, %213 : vector<16x16xf32>
    %216 = arith.maximumf %213, %215 : vector<16x16xf32>
    %217 = arith.addf %216, %9 : vector<16x16xf32>
    %cst_75 = arith.constant dense<0xFF800000> : vector<16xf32>
    %218 = vector.multi_reduction <maximumf>, %217, %cst_75 [1] : vector<16x16xf32> to vector<16xf32>
    %219 = vector.shape_cast %218 : vector<16xf32> to vector<16x1xf32>
    %220 = vector.broadcast %219 : vector<16x1xf32> to vector<16x16xf32>
    %221 = arith.subf %217, %220 : vector<16x16xf32>
    %222 = math.exp %221 : vector<16x16xf32>
    %cst_76 = arith.constant dense<0.000000e+00> : vector<16xf32>
    %223 = vector.multi_reduction <add>, %222, %cst_76 [1] : vector<16x16xf32> to vector<16xf32>
    %224 = vector.shape_cast %223 : vector<16xf32> to vector<16x1xf32>
    %cst_77 = arith.constant dense<0.000000e+00> : vector<16x8xf32>
    %225 = tpu.matmul %222, %208, %cst_77 {dimension_numbers = #tpu.dot_dimension_numbers<[1], [0], [0], [1], [0, 0, 1, 1], [], []>} : vector<16x16xf32>, vector<16x8xf32>, vector<16x8xf32> -> vector<16x8xf32>
    %cst_78 = arith.constant 9.99999968E-21 : f32
    %226 = vector.broadcast %cst_78 : f32 to vector<16x1xf32>
    %227 = arith.maximumf %224, %226 : vector<16x1xf32>
    %cst_79 = arith.constant 1.000000e+00 : f32
    %228 = vector.broadcast %cst_79 : f32 to vector<16x1xf32>
    %229 = arith.divf %228, %227 : vector<16x1xf32>
    %230 = vector.broadcast %229 : vector<16x1xf32> to vector<16x8xf32>
    %231 = arith.mulf %225, %230 : vector<16x8xf32>
    %cst_80 = arith.constant 0.000000e+00 : f32
    %232 = vector.broadcast %cst_80 : f32 to vector<16x8xf32>
    %233 = arith.cmpf ogt, %231, %232 : vector<16x8xf32>
    %cst_81 = arith.constant 0.000000e+00 : f32
    %234 = vector.broadcast %cst_81 : f32 to vector<16x8xf32>
    %235 = arith.minimumf %231, %234 : vector<16x8xf32>
    %236 = math.exp %235 : vector<16x8xf32>
    %cst_82 = arith.constant 1.000000e+00 : f32
    %237 = vector.broadcast %cst_82 : f32 to vector<16x8xf32>
    %238 = arith.subf %236, %237 : vector<16x8xf32>
    %239 = arith.select %233, %231, %238 : vector<16x8xi1>, vector<16x8xf32>
    %c0_83 = arith.constant 0 : index
    %c48 = arith.constant 48 : index
    %240 = vector.load %arg7[%c0_83, %c48] : memref<16x64xf32, #tpu.memory_space<vmem>>, vector<16x8xf32>
    tpu.vector_store %arg7[%c0_83, %c48], %239 {strides = array<i32>} : memref<16x64xf32, #tpu.memory_space<vmem>>, vector<16x8xf32>,
    %241 = vector.extract_strided_slice %3 {offsets = [0, 56], sizes = [16, 8], strides = [1, 1]} : vector<16x64xf32> to vector<16x8xf32>
    %242 = vector.extract_strided_slice %5 {offsets = [0, 7], sizes = [16, 1], strides = [1, 1]} : vector<16x8xf32> to vector<16x1xf32>
    %243 = vector.extract_strided_slice %7 {offsets = [7, 0], sizes = [1, 16], strides = [1, 1]} : vector<8x16xf32> to vector<1x16xf32>
    %244 = vector.broadcast %242 : vector<16x1xf32> to vector<16x16xf32>
    %245 = vector.broadcast %243 : vector<1x16xf32> to vector<16x16xf32>
    %246 = arith.addf %244, %245 : vector<16x16xf32>
    %cst_84 = arith.constant 2.000000e-01 : f32
    %247 = vector.broadcast %cst_84 : f32 to vector<16x16xf32>
    %248 = arith.mulf %247, %246 : vector<16x16xf32>
    %249 = arith.maximumf %246, %248 : vector<16x16xf32>
    %250 = arith.addf %249, %9 : vector<16x16xf32>
    %cst_85 = arith.constant dense<0xFF800000> : vector<16xf32>
    %251 = vector.multi_reduction <maximumf>, %250, %cst_85 [1] : vector<16x16xf32> to vector<16xf32>
    %252 = vector.shape_cast %251 : vector<16xf32> to vector<16x1xf32>
    %253 = vector.broadcast %252 : vector<16x1xf32> to vector<16x16xf32>
    %254 = arith.subf %250, %253 : vector<16x16xf32>
    %255 = math.exp %254 : vector<16x16xf32>
    %cst_86 = arith.constant dense<0.000000e+00> : vector<16xf32>
    %256 = vector.multi_reduction <add>, %255, %cst_86 [1] : vector<16x16xf32> to vector<16xf32>
    %257 = vector.shape_cast %256 : vector<16xf32> to vector<16x1xf32>
    %cst_87 = arith.constant dense<0.000000e+00> : vector<16x8xf32>
    %258 = tpu.matmul %255, %241, %cst_87 {dimension_numbers = #tpu.dot_dimension_numbers<[1], [0], [0], [1], [0, 0, 1, 1], [], []>} : vector<16x16xf32>, vector<16x8xf32>, vector<16x8xf32> -> vector<16x8xf32>
    %cst_88 = arith.constant 9.99999968E-21 : f32
    %259 = vector.broadcast %cst_88 : f32 to vector<16x1xf32>
    %260 = arith.maximumf %257, %259 : vector<16x1xf32>
    %cst_89 = arith.constant 1.000000e+00 : f32
    %261 = vector.broadcast %cst_89 : f32 to vector<16x1xf32>
    %262 = arith.divf %261, %260 : vector<16x1xf32>
    %263 = vector.broadcast %262 : vector<16x1xf32> to vector<16x8xf32>
    %264 = arith.mulf %258, %263 : vector<16x8xf32>
    %cst_90 = arith.constant 0.000000e+00 : f32
    %265 = vector.broadcast %cst_90 : f32 to vector<16x8xf32>
    %266 = arith.cmpf ogt, %264, %265 : vector<16x8xf32>
    %cst_91 = arith.constant 0.000000e+00 : f32
    %267 = vector.broadcast %cst_91 : f32 to vector<16x8xf32>
    %268 = arith.minimumf %264, %267 : vector<16x8xf32>
    %269 = math.exp %268 : vector<16x8xf32>
    %cst_92 = arith.constant 1.000000e+00 : f32
    %270 = vector.broadcast %cst_92 : f32 to vector<16x8xf32>
    %271 = arith.subf %269, %270 : vector<16x8xf32>
    %272 = arith.select %266, %264, %271 : vector<16x8xi1>, vector<16x8xf32>
    %c0_93 = arith.constant 0 : index
    %c56 = arith.constant 56 : index
    %273 = vector.load %arg7[%c0_93, %c56] : memref<16x64xf32, #tpu.memory_space<vmem>>, vector<16x8xf32>
    tpu.vector_store %arg7[%c0_93, %c56], %272 {strides = array<i32>} : memref<16x64xf32, #tpu.memory_space<vmem>>, vector<16x8xf32>,
    return
  }
  func.func @transform_0(%arg0: i32) -> (i32, i32) {
    %c0_i32 = arith.constant 0 : i32
    %c0_i32_0 = arith.constant 0 : i32
    return %arg0, %c0_i32 : i32, i32
  }
  func.func @transform_1(%arg0: i32) -> (i32, i32) {
    %c0_i32 = arith.constant 0 : i32
    %c0_i32_0 = arith.constant 0 : i32
    %c0_i32_1 = arith.constant 0 : i32
    return %c0_i32, %c0_i32_0 : i32, i32
  }
  func.func @transform_2(%arg0: i32) -> (i32, i32) {
    %c0_i32 = arith.constant 0 : i32
    %c0_i32_0 = arith.constant 0 : i32
    %c0_i32_1 = arith.constant 0 : i32
    return %c0_i32, %c0_i32_0 : i32, i32
  }
  func.func @transform_3(%arg0: i32) -> (i32, i32) {
    %c0_i32 = arith.constant 0 : i32
    %c0_i32_0 = arith.constant 0 : i32
    %c0_i32_1 = arith.constant 0 : i32
    return %c0_i32, %c0_i32_0 : i32, i32
  }
  func.func @transform_4(%arg0: i32) -> (i32, i32) {
    %c0_i32 = arith.constant 0 : i32
    %c0_i32_0 = arith.constant 0 : i32
    %c0_i32_1 = arith.constant 0 : i32
    return %c0_i32, %c0_i32_0 : i32, i32
  }
  func.func @transform_5(%arg0: i32) -> (i32, i32) {
    %c0_i32 = arith.constant 0 : i32
    %c0_i32_0 = arith.constant 0 : i32
    return %arg0, %c0_i32 : i32, i32
  }
  func.func @transform_6(%arg0: i32) -> (i32, i32) {
    %c0_i32 = arith.constant 0 : i32
    %c0_i32_0 = arith.constant 0 : i32
    return %arg0, %c0_i32 : i32, i32
  }
}

</mosaic_0001>

<llo_original>
// kernel: tpu_custom_call.1
$region0: #{tpu_custom_call.1}
  #allocation0 [shape = 'u32[]', space=smem, size = 0x4, offset = 0x4, fixed_abs, tag = 'smem constant byte address 0x4 - core index']
  #allocation1 [shape = 'u32[72,128]{1,0:T(1,128)}', space=vmem, size = 0x9000, scoped, tag = 'internal scratch']
  %s0 = inlined_call_operand.hbm [shape: f32[16,32], index: 0, kind: input, shape index: {}]
  %s1 = inlined_call_operand.hbm [shape: f32[16,32], index: 1, kind: input, shape index: {}]
  %s2 = inlined_call_operand.vmem [shape: f32[32,64], index: 2, kind: input, shape index: {}]
  %s3 = inlined_call_operand.vmem [shape: f32[32,8], index: 3, kind: input, shape index: {}]
  %s4 = inlined_call_operand.vmem [shape: f32[8,32], index: 4, kind: input, shape index: {}]
  %s5 = inlined_call_operand.hbm [shape: bf16[16,16], index: 5, kind: input, shape index: {}]
  %s6 = inlined_call_operand.hbm [shape: f32[16,64], index: 6, kind: output, shape index: {}]
  %s7 = sld [smem:[#allocation0]]
  $region46: #{tpu_custom_call.1} parent=0
    _
  %s9 = ssub.s32 1, %s7
  %s10 = scalar_select 0, %s9, %s7
  $region1: #{tpu_custom_call.1} parent=0
    #allocation2 [shape = 'u8[8192]{0}', space=vmem, size = 0x2000, scoped, tag = 'input window, operand 0, single buffered']
    #allocation3 [shape = 's32[1]{0}', space=sflag, size = 0x4, scoped, tag = 'scoped memory for tpu_custom_call.1']
    #allocation4 [shape = 's32[1]{0}', space=sflag, size = 0x4, scoped, tag = 'scoped memory for tpu_custom_call.1']
    #allocation5 [shape = 'u8[8192]{0}', space=vmem, size = 0x2000, scoped, tag = 'input window, operand 1, single buffered']
    #allocation6 [shape = 's32[1]{0}', space=sflag, size = 0x4, scoped, tag = 'scoped memory for tpu_custom_call.1']
    #allocation7 [shape = 'u8[4096]{0}', space=vmem, size = 0x1000, scoped, tag = 'input window, operand 5, single buffered']
    #allocation8 [shape = 'u8[8192]{0}', space=vmem, size = 0x2000, scoped, tag = 'output window, operand 0, single buffered']
    %11 = vsyncpa [#allocation3], 0
    %12 = vsyncpa [#allocation6], 0
    %13 = vsyncpa [#allocation4], 0
    // Predicated region
    $region2: #{tpu_custom_call.1} parent=1 // pred_check
      _
    $region3: #{tpu_custom_call.1} parent=1 // pred_check_branch
      %15 = sbr.rel (0) target = $region5
    $region4: #{tpu_custom_call.1} parent=1 // pred_region
      %17 = vsyncadd [#allocation3], 0
      %s18 = sshll.u32 %s0, 4
      %s19 = int_to_ptr.hbm [resolvable:$true] %s18
      %s20 = sshll.u32 [#allocation2], 4
      %s21 = int_to_ptr.vmem [resolvable:$true] %s20
      %26 = dma.hbm_to_vmem [thread:$0]  %s19, 256, %s21, [#allocation3], 128, 128, 8
    $region5: #{tpu_custom_call.1} parent=1 // pred_fallthru
      _
    // Predicated region
    $region6: #{tpu_custom_call.1} parent=1 // pred_check
      _
    $region7: #{tpu_custom_call.1} parent=1 // pred_check_branch
      %28 = sbr.rel (0) target = $region9
    $region8: #{tpu_custom_call.1} parent=1 // pred_region
      %30 = vsyncadd [#allocation6], 0
      %s31 = sshll.u32 %s1, 4
      %s32 = int_to_ptr.hbm [resolvable:$true] %s31
      %s33 = sshll.u32 [#allocation5], 4
      %s34 = int_to_ptr.vmem [resolvable:$true] %s33
      %39 = dma.hbm_to_vmem [thread:$0]  %s32, 256, %s34, [#allocation6], 128, 128, 8
    $region9: #{tpu_custom_call.1} parent=1 // pred_fallthru
      _
    // Predicated region
    $region10: #{tpu_custom_call.1} parent=1 // pred_check
      _
    $region11: #{tpu_custom_call.1} parent=1 // pred_check_branch
      %41 = sbr.rel (0) target = $region13
    $region12: #{tpu_custom_call.1} parent=1 // pred_region
      _
    $region13: #{tpu_custom_call.1} parent=1 // pred_fallthru
      _
    // Predicated region
    $region14: #{tpu_custom_call.1} parent=1 // pred_check
      _
    $region15: #{tpu_custom_call.1} parent=1 // pred_check_branch
      %43 = sbr.rel (0) target = $region17
    $region16: #{tpu_custom_call.1} parent=1 // pred_region
      _
    $region17: #{tpu_custom_call.1} parent=1 // pred_fallthru
      _
    // Predicated region
    $region18: #{tpu_custom_call.1} parent=1 // pred_check
      _
    $region19: #{tpu_custom_call.1} parent=1 // pred_check_branch
      %45 = sbr.rel (0) target = $region21
    $region20: #{tpu_custom_call.1} parent=1 // pred_region
      _
    $region21: #{tpu_custom_call.1} parent=1 // pred_fallthru
      _
    // Predicated region
    $region22: #{tpu_custom_call.1} parent=1 // pred_check
      _
    $region23: #{tpu_custom_call.1} parent=1 // pred_check_branch
      %47 = sbr.rel (0) target = $region25
    $region24: #{tpu_custom_call.1} parent=1 // pred_region
      %49 = vsyncadd [#allocation6], 0
      %s50 = sshll.u32 %s5, 4
      %s51 = int_to_ptr.hbm [resolvable:$true] %s50
      %s52 = sshll.u32 [#allocation7], 4
      %s53 = int_to_ptr.vmem [resolvable:$true] %s52
      %58 = dma.hbm_to_vmem [thread:$0]  %s51, 128, %s53, [#allocation6], 64, 64, 4
    $region25: #{tpu_custom_call.1} parent=1 // pred_fallthru
      _
    // Predicated region
    $region26: #{tpu_custom_call.1} parent=1 // pred_check
      _
    $region27: #{tpu_custom_call.1} parent=1 // pred_check_branch
      %60 = sbr.rel (0) target = $region29
    $region28: #{tpu_custom_call.1} parent=1 // pred_region
      %62 = dma.done [#allocation3], 256
    $region29: #{tpu_custom_call.1} parent=1 // pred_fallthru
      _
    // Predicated region
    $region30: #{tpu_custom_call.1} parent=1 // pred_check
      _
    $region31: #{tpu_custom_call.1} parent=1 // pred_check_branch
      %64 = sbr.rel (0) target = $region33
    $region32: #{tpu_custom_call.1} parent=1 // pred_region
      %66 = dma.done [#allocation6], 256
    $region33: #{tpu_custom_call.1} parent=1 // pred_fallthru
      _
    // Predicated region
    $region34: #{tpu_custom_call.1} parent=1 // pred_check
      _
    $region35: #{tpu_custom_call.1} parent=1 // pred_check_branch
      %68 = sbr.rel (0) target = $region37
    $region36: #{tpu_custom_call.1} parent=1 // pred_region
      %70 = dma.done [#allocation6], 128
    $region37: #{tpu_custom_call.1} parent=1 // pred_fallthru
      _
    %v71 = vld [vmem:[#allocation2] sm:$0xff]
    %v72 = vld [vmem:[#allocation2 + $0x8] sm:$0xff]
    %v73 = vld [vmem:[#allocation5] sm:$0xff]
    %v74 = vld [vmem:[#allocation5 + $0x8] sm:$0xff]
    %v75 = vld [vmem:[%s2] sm:$0xff]
    %v76 = vld [vmem:[%s2 + $0x8] sm:$0xff]
    %v77 = vld [vmem:[%s2 + $0x10] sm:$0xff]
    %v78 = vld [vmem:[%s2 + $0x18] sm:$0xff]
    %vm79 = vcmask 261120
    %v81 = vsel %vm79, %v73, 0
    %v84 = vsel %vm79, %v74, 0
    %86 = vmatpush.msra.mxu0 0.0
    %87 = vmatpush.msra.mxu0 0.0
    %88 = vmatpush.msra.mxu0 0.0
    %89 = vmatpush.msra.mxu0 0.0
    %90 = vmatpush.msra.mxu0 0.0
    %91 = vmatpush.msra.mxu0 0.0
    %92 = vmatpush.msra.mxu0 0.0
    %93 = vmatpush.msra.mxu0 0.0
    %94 = vmatpush.msra.mxu0 0.0
    %95 = vmatpush.msra.mxu0 0.0
    %96 = vmatpush.msra.mxu0 0.0
    %97 = vmatpush.msra.mxu0 0.0
    %98 = vmatpush.msra.mxu0 %v78
    %99 = vmatpush.msra.mxu0 %v77
    %100 = vmatpush.msra.mxu0 %v76
    %101 = vmatpush.msra.mxu0 %v75
    %102 = vmatmul.f32.gmra.mxu0 %v81
    %v103 = vpop.f32.mrf.mxu0
    %v104 = vadd.f32 0.0, %v103
    %105 = vmatmul.f32.gmra.mxu0 %v84
    %v106 = vpop.f32.mrf.mxu0
    %v107 = vadd.f32 0.0, %v106
    %108 = vdwg.mxu0
    %v109 = vld [vmem:[%s3] sm:$0xff]
    %v110 = vld [vmem:[%s3 + $0x8] sm:$0xff]
    %v111 = vld [vmem:[%s3 + $0x10] sm:$0xff]
    %v112 = vld [vmem:[%s3 + $0x18] sm:$0xff]
    %v114 = vsel %vm79, %v71, 0
    %v117 = vsel %vm79, %v72, 0
    %119 = vmatpush.msra.mxu0 0.0
    %120 = vmatpush.msra.mxu0 0.0
    %121 = vmatpush.msra.mxu0 0.0
    %122 = vmatpush.msra.mxu0 0.0
    %123 = vmatpush.msra.mxu0 0.0
    %124 = vmatpush.msra.mxu0 0.0
    %125 = vmatpush.msra.mxu0 0.0
    %126 = vmatpush.msra.mxu0 0.0
    %127 = vmatpush.msra.mxu0 0.0
    %128 = vmatpush.msra.mxu0 0.0
    %129 = vmatpush.msra.mxu0 0.0
    %130 = vmatpush.msra.mxu0 0.0
    %131 = vmatpush.msra.mxu0 %v112
    %132 = vmatpush.msra.mxu0 %v111
    %133 = vmatpush.msra.mxu0 %v110
    %134 = vmatpush.msra.mxu0 %v109
    %135 = vmatmul.f32.gmra.mxu0 %v114
    %v136 = vpop.f32.mrf.mxu0
    %v137 = vadd.f32 0.0, %v136
    %138 = vmatmul.f32.gmra.mxu0 %v117
    %v139 = vpop.f32.mrf.mxu0
    %v140 = vadd.f32 0.0, %v139
    %141 = vdwg.mxu0
    %v142 = vld [vmem:[%s4] sm:$0xff]
    %v144 = vsel %vm79, %v142, 0
    %146 = vmatpush.xpose.msra.mxu0 0.0
    %147 = vmatpush.xpose.msra.mxu0 0.0
    %148 = vmatpush.xpose.msra.mxu0 0.0
    %149 = vmatpush.xpose.msra.mxu0 0.0
    %150 = vmatpush.xpose.msra.mxu0 0.0
    %151 = vmatpush.xpose.msra.mxu0 0.0
    %152 = vmatpush.xpose.msra.mxu0 0.0
    %153 = vmatpush.xpose.msra.mxu0 0.0
    %154 = vmatpush.xpose.msra.mxu0 0.0
    %155 = vmatpush.xpose.msra.mxu0 0.0
    %156 = vmatpush.xpose.msra.mxu0 0.0
    %157 = vmatpush.xpose.msra.mxu0 0.0
    %158 = vmatpush.xpose.msra.mxu0 0.0
    %159 = vmatpush.xpose.msra.mxu0 0.0
    %160 = vmatpush.xpose.msra.mxu0 %v84
    %161 = vmatpush.xpose.msra.mxu0 %v81
    %162 = vmatmul.f32.gmra.mxu0 %v144
    %v163 = vpop.f32.mrf.mxu0
    %v164 = vadd.f32 0.0, %v163
    %165 = vdwg.mxu0
    %v166 = vld [vmem:[#allocation7] sm:$0xf]
    %v167 = vld [vmem:[#allocation7 + $0x4] sm:$0xf]
    %v168 = vunpack.c.l.bf16 %v166
    %v169 = vunpack.c.l.bf16 %v167
    %171 = vset.pattern.permute.xlu0 0
    %172 = vperm.xlu0 %171, %v137
    %v173 = vpop.permute.xlu0 %172
    %176 = vset.pattern.permute.xlu0 0
    %177 = vperm.xlu0 %176, %v140
    %v178 = vpop.permute.xlu0 %177
    %v180 = vperm.slane %v164, 0
    %v181 = vadd.f32 %v173, %v180
    %v182 = vadd.f32 %v178, %v180
    %v183 = vmul.f32 %v181, 0.2
    %v184 = vmul.f32 %v182, 0.2
    %v185 = vmax.f32 %v181, %v183
    %v186 = vmax.f32 %v182, %v184
    %v187 = vadd.f32 %v185, %v168
    %v188 = vadd.f32 %v186, %v169
    %vm189 = vcmask 130048
    %v190 = vsel %vm189, %v187, -inf
    %191 = vmax.xlane.f32.xlu0 %v190
    %v192 = vpop.xlane.xlu0 %191
    %v193 = vsel %vm189, %v188, -inf
    %194 = vmax.xlane.f32.xlu0 %v193
    %v195 = vpop.xlane.xlu0 %194
    %v196 = vsub.f32 %v187, %v192
    %v197 = vsub.f32 %v188, %v195
    %v198 = vmul.f32 %v196, 1.442695
    %v199 = vpow.pop %v198
    %v200 = vmul.f32 %v197, 1.442695
    %v201 = vpow.pop %v200
    %v202 = vsel %vm189, %v199, 0.0
    %203 = vadd.xlane.f32.xlu0 %v202
    %v204 = vpop.xlane.xlu0 %203
    %v205 = vsel %vm189, %v201, 0.0
    %206 = vadd.xlane.f32.xlu0 %v205
    %v207 = vpop.xlane.xlu0 %206
    %v209 = vsel %vm189, %v199, 0
    %v212 = vsel %vm189, %v201, 0
    %214 = vmatpush.msra.mxu0 0.0
    %215 = vmatpush.msra.mxu0 0.0
    %216 = vmatpush.msra.mxu0 0.0
    %217 = vmatpush.msra.mxu0 0.0
    %218 = vmatpush.msra.mxu0 0.0
    %219 = vmatpush.msra.mxu0 0.0
    %220 = vmatpush.msra.mxu0 0.0
    %221 = vmatpush.msra.mxu0 0.0
    %222 = vmatpush.msra.mxu0 0.0
    %223 = vmatpush.msra.mxu0 0.0
    %224 = vmatpush.msra.mxu0 0.0
    %225 = vmatpush.msra.mxu0 0.0
    %226 = vmatpush.msra.mxu0 0.0
    %227 = vmatpush.msra.mxu0 0.0
    %228 = vmatpush.msra.mxu0 %v107
    %229 = vmatpush.msra.mxu0 %v104
    %230 = vmatmul.f32.gmra.mxu0 %v209
    %v231 = vpop.f32.mrf.mxu0
    %v232 = vadd.f32 0.0, %v231
    %233 = vmatmul.f32.gmra.mxu0 %v212
    %v234 = vpop.f32.mrf.mxu0
    %v235 = vadd.f32 0.0, %v234
    %236 = vdwg.mxu0
    %v237 = vmax.f32 %v204, 1e-20
    %v238 = vmax.f32 %v207, 1e-20
    %v239 = vrcp.pop %v237
    %v240 = vmul.f32 %v237, %v239
    %v241 = vsub.f32 1.0, %v240
    %v242 = vmul.f32 %v239, %v241
    %v243 = vadd.f32 %v239, %v242
    %vm244 = vweird.f32 %v237
    %vm245 = vweird.f32 %v239
    %vm246 = vmor %vm244, %vm245
    %v247 = vsel %vm246, %v239, %v243
    %v248 = vand.u32 2147483647, %v237
    %vm249 = vcmp.eq.f32.partialorder %v248, 8.507059e+37
    %v250 = vand.u32 %v237, 2147483648
    %v251 = vor.u32 1.1754944e-38, %v250
    %v252 = vsel %vm249, %v251, %v247
    %v253 = vmul.f32 1.0, %v252
    %v254 = vrcp.pop %v238
    %v255 = vmul.f32 %v238, %v254
    %v256 = vsub.f32 1.0, %v255
    %v257 = vmul.f32 %v254, %v256
    %v258 = vadd.f32 %v254, %v257
    %vm259 = vweird.f32 %v238
    %vm260 = vweird.f32 %v254
    %vm261 = vmor %vm259, %vm260
    %v262 = vsel %vm261, %v254, %v258
    %v263 = vand.u32 2147483647, %v238
    %vm264 = vcmp.eq.f32.partialorder %v263, 8.507059e+37
    %v265 = vand.u32 %v238, 2147483648
    %v266 = vor.u32 1.1754944e-38, %v265
    %v267 = vsel %vm264, %v266, %v262
    %v268 = vmul.f32 1.0, %v267
    %v269 = vmul.f32 %v232, %v253
    %v270 = vmul.f32 %v235, %v268
    %vm271 = vcmp.gt.f32.partialorder %v269, 0.0
    %vm272 = vcmp.gt.f32.partialorder %v270, 0.0
    %v273 = vmin.f32 %v269, 0.0
    %v274 = vmin.f32 %v270, 0.0
    %v275 = vmul.f32 %v273, 1.442695
    %v276 = vpow.pop %v275
    %v277 = vmul.f32 %v274, 1.442695
    %v278 = vpow.pop %v277
    %v279 = vsub.f32 %v276, 1.0
    %v280 = vsub.f32 %v278, 1.0
    %v281 = vsel %vm271, %v269, %v279
    %v282 = vsel %vm272, %v270, %v280
    %vm283 = vcmask 64512
    %284 = vst.msk [vmem:[#allocation8] sm:$0xff] %vm283, %v281
    %285 = vst.msk [vmem:[#allocation8 + $0x8] sm:$0xff] %vm283, %v282
    %286 = vset.pattern.permute.xlu0 1
    %287 = vperm.xlu0 %286, %v137
    %v288 = vpop.permute.xlu0 %287
    %290 = vset.pattern.permute.xlu0 1
    %291 = vperm.xlu0 %290, %v140
    %v292 = vpop.permute.xlu0 %291
    %v294 = vperm.slane %v164, 1
    %v295 = vadd.f32 %v288, %v294
    %v296 = vadd.f32 %v292, %v294
    %v297 = vmul.f32 %v295, 0.2
    %v298 = vmul.f32 %v296, 0.2
    %v299 = vmax.f32 %v295, %v297
    %v300 = vmax.f32 %v296, %v298
    %v301 = vadd.f32 %v299, %v168
    %v302 = vadd.f32 %v300, %v169
    %v303 = vsel %vm189, %v301, -inf
    %304 = vmax.xlane.f32.xlu0 %v303
    %v305 = vpop.xlane.xlu0 %304
    %v306 = vsel %vm189, %v302, -inf
    %307 = vmax.xlane.f32.xlu0 %v306
    %v308 = vpop.xlane.xlu0 %307
    %v309 = vsub.f32 %v301, %v305
    %v310 = vsub.f32 %v302, %v308
    %v311 = vmul.f32 %v309, 1.442695
    %v312 = vpow.pop %v311
    %v313 = vmul.f32 %v310, 1.442695
    %v314 = vpow.pop %v313
    %v315 = vsel %vm189, %v312, 0.0
    %316 = vadd.xlane.f32.xlu0 %v315
    %v317 = vpop.xlane.xlu0 %316
    %v318 = vsel %vm189, %v314, 0.0
    %319 = vadd.xlane.f32.xlu0 %v318
    %v320 = vpop.xlane.xlu0 %319
    %323 = vrot.lane.b32.xlu0 %v104, 120
    %v324 = vpop.permute.xlu0 %323
    %325 = vrot.lane.b32.xlu0 %v107, 120
    %v326 = vpop.permute.xlu0 %325
    %v330 = vsel %vm189, %v312, 0
    %v333 = vsel %vm189, %v314, 0
    %335 = vmatpush.msra.mxu0 0.0
    %336 = vmatpush.msra.mxu0 0.0
    %337 = vmatpush.msra.mxu0 0.0
    %338 = vmatpush.msra.mxu0 0.0
    %339 = vmatpush.msra.mxu0 0.0
    %340 = vmatpush.msra.mxu0 0.0
    %341 = vmatpush.msra.mxu0 0.0
    %342 = vmatpush.msra.mxu0 0.0
    %343 = vmatpush.msra.mxu0 0.0
    %344 = vmatpush.msra.mxu0 0.0
    %345 = vmatpush.msra.mxu0 0.0
    %346 = vmatpush.msra.mxu0 0.0
    %347 = vmatpush.msra.mxu0 0.0
    %348 = vmatpush.msra.mxu0 0.0
    %349 = vmatpush.msra.mxu0 %v326
    %350 = vmatpush.msra.mxu0 %v324
    %351 = vmatmul.f32.gmra.mxu0 %v330
    %v352 = vpop.f32.mrf.mxu0
    %v353 = vadd.f32 0.0, %v352
    %354 = vmatmul.f32.gmra.mxu0 %v333
    %v355 = vpop.f32.mrf.mxu0
    %v356 = vadd.f32 0.0, %v355
    %357 = vdwg.mxu0
    %v358 = vmax.f32 %v317, 1e-20
    %v359 = vmax.f32 %v320, 1e-20
    %v360 = vrcp.pop %v358
    %v361 = vmul.f32 %v358, %v360
    %v362 = vsub.f32 1.0, %v361
    %v363 = vmul.f32 %v360, %v362
    %v364 = vadd.f32 %v360, %v363
    %vm365 = vweird.f32 %v358
    %vm366 = vweird.f32 %v360
    %vm367 = vmor %vm365, %vm366
    %v368 = vsel %vm367, %v360, %v364
    %v369 = vand.u32 2147483647, %v358
    %vm370 = vcmp.eq.f32.partialorder %v369, 8.507059e+37
    %v371 = vand.u32 %v358, 2147483648
    %v372 = vor.u32 1.1754944e-38, %v371
    %v373 = vsel %vm370, %v372, %v368
    %v374 = vmul.f32 1.0, %v373
    %v375 = vrcp.pop %v359
    %v376 = vmul.f32 %v359, %v375
    %v377 = vsub.f32 1.0, %v376
    %v378 = vmul.f32 %v375, %v377
    %v379 = vadd.f32 %v375, %v378
    %vm380 = vweird.f32 %v359
    %vm381 = vweird.f32 %v375
    %vm382 = vmor %vm380, %vm381
    %v383 = vsel %vm382, %v375, %v379
    %v384 = vand.u32 2147483647, %v359
    %vm385 = vcmp.eq.f32.partialorder %v384, 8.507059e+37
    %v386 = vand.u32 %v359, 2147483648
    %v387 = vor.u32 1.1754944e-38, %v386
    %v388 = vsel %vm385, %v387, %v383
    %v389 = vmul.f32 1.0, %v388
    %v390 = vmul.f32 %v353, %v374
    %v391 = vmul.f32 %v356, %v389
    %vm392 = vcmp.gt.f32.partialorder %v390, 0.0
    %vm393 = vcmp.gt.f32.partialorder %v391, 0.0
    %v394 = vmin.f32 %v390, 0.0
    %v395 = vmin.f32 %v391, 0.0
    %v396 = vmul.f32 %v394, 1.442695
    %v397 = vpow.pop %v396
    %v398 = vmul.f32 %v395, 1.442695
    %v399 = vpow.pop %v398
    %v400 = vsub.f32 %v397, 1.0
    %v401 = vsub.f32 %v399, 1.0
    %v402 = vsel %vm392, %v390, %v400
    %v403 = vsel %vm393, %v391, %v401
    %406 = vrot.lane.b32.xlu0 %v402, 8
    %v407 = vpop.permute.xlu0 %406
    %408 = vrot.lane.b32.xlu0 %v403, 8
    %v409 = vpop.permute.xlu0 %408
    %vm412 = vcmask 130112
    %413 = vst.msk [vmem:[#allocation8] sm:$0xff] %vm412, %v407
    %414 = vst.msk [vmem:[#allocation8 + $0x8] sm:$0xff] %vm412, %v409
    %415 = vset.pattern.permute.xlu0 2
    %416 = vperm.xlu0 %415, %v137
    %v417 = vpop.permute.xlu0 %416
    %419 = vset.pattern.permute.xlu0 2
    %420 = vperm.xlu0 %419, %v140
    %v421 = vpop.permute.xlu0 %420
    %v423 = vperm.slane %v164, 2
    %v424 = vadd.f32 %v417, %v423
    %v425 = vadd.f32 %v421, %v423
    %v426 = vmul.f32 %v424, 0.2
    %v427 = vmul.f32 %v425, 0.2
    %v428 = vmax.f32 %v424, %v426
    %v429 = vmax.f32 %v425, %v427
    %v430 = vadd.f32 %v428, %v168
    %v431 = vadd.f32 %v429, %v169
    %v432 = vsel %vm189, %v430, -inf
    %433 = vmax.xlane.f32.xlu0 %v432
    %v434 = vpop.xlane.xlu0 %433
    %v435 = vsel %vm189, %v431, -inf
    %436 = vmax.xlane.f32.xlu0 %v435
    %v437 = vpop.xlane.xlu0 %436
    %v438 = vsub.f32 %v430, %v434
    %v439 = vsub.f32 %v431, %v437
    %v440 = vmul.f32 %v438, 1.442695
    %v441 = vpow.pop %v440
    %v442 = vmul.f32 %v439, 1.442695
    %v443 = vpow.pop %v442
    %v444 = vsel %vm189, %v441, 0.0
    %445 = vadd.xlane.f32.xlu0 %v444
    %v446 = vpop.xlane.xlu0 %445
    %v447 = vsel %vm189, %v443, 0.0
    %448 = vadd.xlane.f32.xlu0 %v447
    %v449 = vpop.xlane.xlu0 %448
    %450 = vrot.lane.b32.xlu0 %v104, 112
    %v451 = vpop.permute.xlu0 %450
    %452 = vrot.lane.b32.xlu0 %v107, 112
    %v453 = vpop.permute.xlu0 %452
    %v457 = vsel %vm189, %v441, 0
    %v460 = vsel %vm189, %v443, 0
    %462 = vmatpush.msra.mxu0 0.0
    %463 = vmatpush.msra.mxu0 0.0
    %464 = vmatpush.msra.mxu0 0.0
    %465 = vmatpush.msra.mxu0 0.0
    %466 = vmatpush.msra.mxu0 0.0
    %467 = vmatpush.msra.mxu0 0.0
    %468 = vmatpush.msra.mxu0 0.0
    %469 = vmatpush.msra.mxu0 0.0
    %470 = vmatpush.msra.mxu0 0.0
    %471 = vmatpush.msra.mxu0 0.0
    %472 = vmatpush.msra.mxu0 0.0
    %473 = vmatpush.msra.mxu0 0.0
    %474 = vmatpush.msra.mxu0 0.0
    %475 = vmatpush.msra.mxu0 0.0
    %476 = vmatpush.msra.mxu0 %v453
    %477 = vmatpush.msra.mxu0 %v451
    %478 = vmatmul.f32.gmra.mxu0 %v457
    %v479 = vpop.f32.mrf.mxu0
    %v480 = vadd.f32 0.0, %v479
    %481 = vmatmul.f32.gmra.mxu0 %v460
    %v482 = vpop.f32.mrf.mxu0
    %v483 = vadd.f32 0.0, %v482
    %484 = vdwg.mxu0
    %v485 = vmax.f32 %v446, 1e-20
    %v486 = vmax.f32 %v449, 1e-20
    %v487 = vrcp.pop %v485
    %v488 = vmul.f32 %v485, %v487
    %v489 = vsub.f32 1.0, %v488
    %v490 = vmul.f32 %v487, %v489
    %v491 = vadd.f32 %v487, %v490
    %vm492 = vweird.f32 %v485
    %vm493 = vweird.f32 %v487
    %vm494 = vmor %vm492, %vm493
    %v495 = vsel %vm494, %v487, %v491
    %v496 = vand.u32 2147483647, %v485
    %vm497 = vcmp.eq.f32.partialorder %v496, 8.507059e+37
    %v498 = vand.u32 %v485, 2147483648
    %v499 = vor.u32 1.1754944e-38, %v498
    %v500 = vsel %vm497, %v499, %v495
    %v501 = vmul.f32 1.0, %v500
    %v502 = vrcp.pop %v486
    %v503 = vmul.f32 %v486, %v502
    %v504 = vsub.f32 1.0, %v503
    %v505 = vmul.f32 %v502, %v504
    %v506 = vadd.f32 %v502, %v505
    %vm507 = vweird.f32 %v486
    %vm508 = vweird.f32 %v502
    %vm509 = vmor %vm507, %vm508
    %v510 = vsel %vm509, %v502, %v506
    %v511 = vand.u32 2147483647, %v486
    %vm512 = vcmp.eq.f32.partialorder %v511, 8.507059e+37
    %v513 = vand.u32 %v486, 2147483648
    %v514 = vor.u32 1.1754944e-38, %v513
    %v515 = vsel %vm512, %v514, %v510
    %v516 = vmul.f32 1.0, %v515
    %v517 = vmul.f32 %v480, %v501
    %v518 = vmul.f32 %v483, %v516
    %vm519 = vcmp.gt.f32.partialorder %v517, 0.0
    %vm520 = vcmp.gt.f32.partialorder %v518, 0.0
    %v521 = vmin.f32 %v517, 0.0
    %v522 = vmin.f32 %v518, 0.0
    %v523 = vmul.f32 %v521, 1.442695
    %v524 = vpow.pop %v523
    %v525 = vmul.f32 %v522, 1.442695
    %v526 = vpow.pop %v525
    %v527 = vsub.f32 %v524, 1.0
    %v528 = vsub.f32 %v526, 1.0
    %v529 = vsel %vm519, %v517, %v527
    %v530 = vsel %vm520, %v518, %v528
    %533 = vrot.lane.b32.xlu0 %v529, 16
    %v534 = vpop.permute.xlu0 %533
    %535 = vrot.lane.b32.xlu0 %v530, 16
    %v536 = vpop.permute.xlu0 %535
    %vm539 = vcmask 195712
    %540 = vst.msk [vmem:[#allocation8] sm:$0xff] %vm539, %v534
    %541 = vst.msk [vmem:[#allocation8 + $0x8] sm:$0xff] %vm539, %v536
    %542 = vset.pattern.permute.xlu0 3
    %543 = vperm.xlu0 %542, %v137
    %v544 = vpop.permute.xlu0 %543
    %546 = vset.pattern.permute.xlu0 3
    %547 = vperm.xlu0 %546, %v140
    %v548 = vpop.permute.xlu0 %547
    %v550 = vperm.slane %v164, 3
    %v551 = vadd.f32 %v544, %v550
    %v552 = vadd.f32 %v548, %v550
    %v553 = vmul.f32 %v551, 0.2
    %v554 = vmul.f32 %v552, 0.2
    %v555 = vmax.f32 %v551, %v553
    %v556 = vmax.f32 %v552, %v554
    %v557 = vadd.f32 %v555, %v168
    %v558 = vadd.f32 %v556, %v169
    %v559 = vsel %vm189, %v557, -inf
    %560 = vmax.xlane.f32.xlu0 %v559
    %v561 = vpop.xlane.xlu0 %560
    %v562 = vsel %vm189, %v558, -inf
    %563 = vmax.xlane.f32.xlu0 %v562
    %v564 = vpop.xlane.xlu0 %563
    %v565 = vsub.f32 %v557, %v561
    %v566 = vsub.f32 %v558, %v564
    %v567 = vmul.f32 %v565, 1.442695
    %v568 = vpow.pop %v567
    %v569 = vmul.f32 %v566, 1.442695
    %v570 = vpow.pop %v569
    %v571 = vsel %vm189, %v568, 0.0
    %572 = vadd.xlane.f32.xlu0 %v571
    %v573 = vpop.xlane.xlu0 %572
    %v574 = vsel %vm189, %v570, 0.0
    %575 = vadd.xlane.f32.xlu0 %v574
    %v576 = vpop.xlane.xlu0 %575
    %577 = vrot.lane.b32.xlu0 %v104, 104
    %v578 = vpop.permute.xlu0 %577
    %579 = vrot.lane.b32.xlu0 %v107, 104
    %v580 = vpop.permute.xlu0 %579
    %v584 = vsel %vm189, %v568, 0
    %v587 = vsel %vm189, %v570, 0
    %589 = vmatpush.msra.mxu0 0.0
    %590 = vmatpush.msra.mxu0 0.0
    %591 = vmatpush.msra.mxu0 0.0
    %592 = vmatpush.msra.mxu0 0.0
    %593 = vmatpush.msra.mxu0 0.0
    %594 = vmatpush.msra.mxu0 0.0
    %595 = vmatpush.msra.mxu0 0.0
    %596 = vmatpush.msra.mxu0 0.0
    %597 = vmatpush.msra.mxu0 0.0
    %598 = vmatpush.msra.mxu0 0.0
    %599 = vmatpush.msra.mxu0 0.0
    %600 = vmatpush.msra.mxu0 0.0
    %601 = vmatpush.msra.mxu0 0.0
    %602 = vmatpush.msra.mxu0 0.0
    %603 = vmatpush.msra.mxu0 %v580
    %604 = vmatpush.msra.mxu0 %v578
    %605 = vmatmul.f32.gmra.mxu0 %v584
    %v606 = vpop.f32.mrf.mxu0
    %v607 = vadd.f32 0.0, %v606
    %608 = vmatmul.f32.gmra.mxu0 %v587
    %v609 = vpop.f32.mrf.mxu0
    %v610 = vadd.f32 0.0, %v609
    %611 = vdwg.mxu0
    %v612 = vmax.f32 %v573, 1e-20
    %v613 = vmax.f32 %v576, 1e-20
    %v614 = vrcp.pop %v612
    %v615 = vmul.f32 %v612, %v614
    %v616 = vsub.f32 1.0, %v615
    %v617 = vmul.f32 %v614, %v616
    %v618 = vadd.f32 %v614, %v617
    %vm619 = vweird.f32 %v612
    %vm620 = vweird.f32 %v614
    %vm621 = vmor %vm619, %vm620
    %v622 = vsel %vm621, %v614, %v618
    %v623 = vand.u32 2147483647, %v612
    %vm624 = vcmp.eq.f32.partialorder %v623, 8.507059e+37
    %v625 = vand.u32 %v612, 2147483648
    %v626 = vor.u32 1.1754944e-38, %v625
    %v627 = vsel %vm624, %v626, %v622
    %v628 = vmul.f32 1.0, %v627
    %v629 = vrcp.pop %v613
    %v630 = vmul.f32 %v613, %v629
    %v631 = vsub.f32 1.0, %v630
    %v632 = vmul.f32 %v629, %v631
    %v633 = vadd.f32 %v629, %v632
    %vm634 = vweird.f32 %v613
    %vm635 = vweird.f32 %v629
    %vm636 = vmor %vm634, %vm635
    %v637 = vsel %vm636, %v629, %v633
    %v638 = vand.u32 2147483647, %v613
    %vm639 = vcmp.eq.f32.partialorder %v638, 8.507059e+37
    %v640 = vand.u32 %v613, 2147483648
    %v641 = vor.u32 1.1754944e-38, %v640
    %v642 = vsel %vm639, %v641, %v637
    %v643 = vmul.f32 1.0, %v642
    %v644 = vmul.f32 %v607, %v628
    %v645 = vmul.f32 %v610, %v643
    %vm646 = vcmp.gt.f32.partialorder %v644, 0.0
    %vm647 = vcmp.gt.f32.partialorder %v645, 0.0
    %v648 = vmin.f32 %v644, 0.0
    %v649 = vmin.f32 %v645, 0.0
    %v650 = vmul.f32 %v648, 1.442695
    %v651 = vpow.pop %v650
    %v652 = vmul.f32 %v649, 1.442695
    %v653 = vpow.pop %v652
    %v654 = vsub.f32 %v651, 1.0
    %v655 = vsub.f32 %v653, 1.0
    %v656 = vsel %vm646, %v644, %v654
    %v657 = vsel %vm647, %v645, %v655
    %660 = vrot.lane.b32.xlu0 %v656, 24
    %v661 = vpop.permute.xlu0 %660
    %662 = vrot.lane.b32.xlu0 %v657, 24
    %v663 = vpop.permute.xlu0 %662
    %vm666 = vcmask 261312
    %667 = vst.msk [vmem:[#allocation8] sm:$0xff] %vm666, %v661
    %668 = vst.msk [vmem:[#allocation8 + $0x8] sm:$0xff] %vm666, %v663
    %669 = vset.pattern.permute.xlu0 4
    %670 = vperm.xlu0 %669, %v137
    %v671 = vpop.permute.xlu0 %670
    %673 = vset.pattern.permute.xlu0 4
    %674 = vperm.xlu0 %673, %v140
    %v675 = vpop.permute.xlu0 %674
    %v677 = vperm.slane %v164, 4
    %v678 = vadd.f32 %v671, %v677
    %v679 = vadd.f32 %v675, %v677
    %v680 = vmul.f32 %v678, 0.2
    %v681 = vmul.f32 %v679, 0.2
    %v682 = vmax.f32 %v678, %v680
    %v683 = vmax.f32 %v679, %v681
    %v684 = vadd.f32 %v682, %v168
    %v685 = vadd.f32 %v683, %v169
    %v686 = vsel %vm189, %v684, -inf
    %687 = vmax.xlane.f32.xlu0 %v686
    %v688 = vpop.xlane.xlu0 %687
    %v689 = vsel %vm189, %v685, -inf
    %690 = vmax.xlane.f32.xlu0 %v689
    %v691 = vpop.xlane.xlu0 %690
    %v692 = vsub.f32 %v684, %v688
    %v693 = vsub.f32 %v685, %v691
    %v694 = vmul.f32 %v692, 1.442695
    %v695 = vpow.pop %v694
    %v696 = vmul.f32 %v693, 1.442695
    %v697 = vpow.pop %v696
    %v698 = vsel %vm189, %v695, 0.0
    %699 = vadd.xlane.f32.xlu0 %v698
    %v700 = vpop.xlane.xlu0 %699
    %v701 = vsel %vm189, %v697, 0.0
    %702 = vadd.xlane.f32.xlu0 %v701
    %v703 = vpop.xlane.xlu0 %702
    %704 = vrot.lane.b32.xlu0 %v104, 96
    %v705 = vpop.permute.xlu0 %704
    %706 = vrot.lane.b32.xlu0 %v107, 96
    %v707 = vpop.permute.xlu0 %706
    %v711 = vsel %vm189, %v695, 0
    %v714 = vsel %vm189, %v697, 0
    %716 = vmatpush.msra.mxu0 0.0
    %717 = vmatpush.msra.mxu0 0.0
    %718 = vmatpush.msra.mxu0 0.0
    %719 = vmatpush.msra.mxu0 0.0
    %720 = vmatpush.msra.mxu0 0.0
    %721 = vmatpush.msra.mxu0 0.0
    %722 = vmatpush.msra.mxu0 0.0
    %723 = vmatpush.msra.mxu0 0.0
    %724 = vmatpush.msra.mxu0 0.0
    %725 = vmatpush.msra.mxu0 0.0
    %726 = vmatpush.msra.mxu0 0.0
    %727 = vmatpush.msra.mxu0 0.0
    %728 = vmatpush.msra.mxu0 0.0
    %729 = vmatpush.msra.mxu0 0.0
    %730 = vmatpush.msra.mxu0 %v707
    %731 = vmatpush.msra.mxu0 %v705
    %732 = vmatmul.f32.gmra.mxu0 %v711
    %v733 = vpop.f32.mrf.mxu0
    %v734 = vadd.f32 0.0, %v733
    %735 = vmatmul.f32.gmra.mxu0 %v714
    %v736 = vpop.f32.mrf.mxu0
    %v737 = vadd.f32 0.0, %v736
    %738 = vdwg.mxu0
    %v739 = vmax.f32 %v700, 1e-20
    %v740 = vmax.f32 %v703, 1e-20
    %v741 = vrcp.pop %v739
    %v742 = vmul.f32 %v739, %v741
    %v743 = vsub.f32 1.0, %v742
    %v744 = vmul.f32 %v741, %v743
    %v745 = vadd.f32 %v741, %v744
    %vm746 = vweird.f32 %v739
    %vm747 = vweird.f32 %v741
    %vm748 = vmor %vm746, %vm747
    %v749 = vsel %vm748, %v741, %v745
    %v750 = vand.u32 2147483647, %v739
    %vm751 = vcmp.eq.f32.partialorder %v750, 8.507059e+37
    %v752 = vand.u32 %v739, 2147483648
    %v753 = vor.u32 1.1754944e-38, %v752
    %v754 = vsel %vm751, %v753, %v749
    %v755 = vmul.f32 1.0, %v754
    %v756 = vrcp.pop %v740
    %v757 = vmul.f32 %v740, %v756
    %v758 = vsub.f32 1.0, %v757
    %v759 = vmul.f32 %v756, %v758
    %v760 = vadd.f32 %v756, %v759
    %vm761 = vweird.f32 %v740
    %vm762 = vweird.f32 %v756
    %vm763 = vmor %vm761, %vm762
    %v764 = vsel %vm763, %v756, %v760
    %v765 = vand.u32 2147483647, %v740
    %vm766 = vcmp.eq.f32.partialorder %v765, 8.507059e+37
    %v767 = vand.u32 %v740, 2147483648
    %v768 = vor.u32 1.1754944e-38, %v767
    %v769 = vsel %vm766, %v768, %v764
    %v770 = vmul.f32 1.0, %v769
    %v771 = vmul.f32 %v734, %v755
    %v772 = vmul.f32 %v737, %v770
    %vm773 = vcmp.gt.f32.partialorder %v771, 0.0
    %vm774 = vcmp.gt.f32.partialorder %v772, 0.0
    %v775 = vmin.f32 %v771, 0.0
    %v776 = vmin.f32 %v772, 0.0
    %v777 = vmul.f32 %v775, 1.442695
    %v778 = vpow.pop %v777
    %v779 = vmul.f32 %v776, 1.442695
    %v780 = vpow.pop %v779
    %v781 = vsub.f32 %v778, 1.0
    %v782 = vsub.f32 %v780, 1.0
    %v783 = vsel %vm773, %v771, %v781
    %v784 = vsel %vm774, %v772, %v782
    %787 = vrot.lane.b32.xlu0 %v783, 32
    %v788 = vpop.permute.xlu0 %787
    %789 = vrot.lane.b32.xlu0 %v784, 32
    %v790 = vpop.permute.xlu0 %789
    %vm793 = vcmask 326912
    %794 = vst.msk [vmem:[#allocation8] sm:$0xff] %vm793, %v788
    %795 = vst.msk [vmem:[#allocation8 + $0x8] sm:$0xff] %vm793, %v790
    %796 = vset.pattern.permute.xlu0 5
    %797 = vperm.xlu0 %796, %v137
    %v798 = vpop.permute.xlu0 %797
    %800 = vset.pattern.permute.xlu0 5
    %801 = vperm.xlu0 %800, %v140
    %v802 = vpop.permute.xlu0 %801
    %v804 = vperm.slane %v164, 5
    %v805 = vadd.f32 %v798, %v804
    %v806 = vadd.f32 %v802, %v804
    %v807 = vmul.f32 %v805, 0.2
    %v808 = vmul.f32 %v806, 0.2
    %v809 = vmax.f32 %v805, %v807
    %v810 = vmax.f32 %v806, %v808
    %v811 = vadd.f32 %v809, %v168
    %v812 = vadd.f32 %v810, %v169
    %v813 = vsel %vm189, %v811, -inf
    %814 = vmax.xlane.f32.xlu0 %v813
    %v815 = vpop.xlane.xlu0 %814
    %v816 = vsel %vm189, %v812, -inf
    %817 = vmax.xlane.f32.xlu0 %v816
    %v818 = vpop.xlane.xlu0 %817
    %v819 = vsub.f32 %v811, %v815
    %v820 = vsub.f32 %v812, %v818
    %v821 = vmul.f32 %v819, 1.442695
    %v822 = vpow.pop %v821
    %v823 = vmul.f32 %v820, 1.442695
    %v824 = vpow.pop %v823
    %v825 = vsel %vm189, %v822, 0.0
    %826 = vadd.xlane.f32.xlu0 %v825
    %v827 = vpop.xlane.xlu0 %826
    %v828 = vsel %vm189, %v824, 0.0
    %829 = vadd.xlane.f32.xlu0 %v828
    %v830 = vpop.xlane.xlu0 %829
    %831 = vrot.lane.b32.xlu0 %v104, 88
    %v832 = vpop.permute.xlu0 %831
    %833 = vrot.lane.b32.xlu0 %v107, 88
    %v834 = vpop.permute.xlu0 %833
    %v838 = vsel %vm189, %v822, 0
    %v841 = vsel %vm189, %v824, 0
    %843 = vmatpush.msra.mxu0 0.0
    %844 = vmatpush.msra.mxu0 0.0
    %845 = vmatpush.msra.mxu0 0.0
    %846 = vmatpush.msra.mxu0 0.0
    %847 = vmatpush.msra.mxu0 0.0
    %848 = vmatpush.msra.mxu0 0.0
    %849 = vmatpush.msra.mxu0 0.0
    %850 = vmatpush.msra.mxu0 0.0
    %851 = vmatpush.msra.mxu0 0.0
    %852 = vmatpush.msra.mxu0 0.0
    %853 = vmatpush.msra.mxu0 0.0
    %854 = vmatpush.msra.mxu0 0.0
    %855 = vmatpush.msra.mxu0 0.0
    %856 = vmatpush.msra.mxu0 0.0
    %857 = vmatpush.msra.mxu0 %v834
    %858 = vmatpush.msra.mxu0 %v832
    %859 = vmatmul.f32.gmra.mxu0 %v838
    %v860 = vpop.f32.mrf.mxu0
    %v861 = vadd.f32 0.0, %v860
    %862 = vmatmul.f32.gmra.mxu0 %v841
    %v863 = vpop.f32.mrf.mxu0
    %v864 = vadd.f32 0.0, %v863
    %865 = vdwg.mxu0
    %v866 = vmax.f32 %v827, 1e-20
    %v867 = vmax.f32 %v830, 1e-20
    %v868 = vrcp.pop %v866
    %v869 = vmul.f32 %v866, %v868
    %v870 = vsub.f32 1.0, %v869
    %v871 = vmul.f32 %v868, %v870
    %v872 = vadd.f32 %v868, %v871
    %vm873 = vweird.f32 %v866
    %vm874 = vweird.f32 %v868
    %vm875 = vmor %vm873, %vm874
    %v876 = vsel %vm875, %v868, %v872
    %v877 = vand.u32 2147483647, %v866
    %vm878 = vcmp.eq.f32.partialorder %v877, 8.507059e+37
    %v879 = vand.u32 %v866, 2147483648
    %v880 = vor.u32 1.1754944e-38, %v879
    %v881 = vsel %vm878, %v880, %v876
    %v882 = vmul.f32 1.0, %v881
    %v883 = vrcp.pop %v867
    %v884 = vmul.f32 %v867, %v883
    %v885 = vsub.f32 1.0, %v884
    %v886 = vmul.f32 %v883, %v885
    %v887 = vadd.f32 %v883, %v886
    %vm888 = vweird.f32 %v867
    %vm889 = vweird.f32 %v883
    %vm890 = vmor %vm888, %vm889
    %v891 = vsel %vm890, %v883, %v887
    %v892 = vand.u32 2147483647, %v867
    %vm893 = vcmp.eq.f32.partialorder %v892, 8.507059e+37
    %v894 = vand.u32 %v867, 2147483648
    %v895 = vor.u32 1.1754944e-38, %v894
    %v896 = vsel %vm893, %v895, %v891
    %v897 = vmul.f32 1.0, %v896
    %v898 = vmul.f32 %v861, %v882
    %v899 = vmul.f32 %v864, %v897
    %vm900 = vcmp.gt.f32.partialorder %v898, 0.0
    %vm901 = vcmp.gt.f32.partialorder %v899, 0.0
    %v902 = vmin.f32 %v898, 0.0
    %v903 = vmin.f32 %v899, 0.0
    %v904 = vmul.f32 %v902, 1.442695
    %v905 = vpow.pop %v904
    %v906 = vmul.f32 %v903, 1.442695
    %v907 = vpow.pop %v906
    %v908 = vsub.f32 %v905, 1.0
    %v909 = vsub.f32 %v907, 1.0
    %v910 = vsel %vm900, %v898, %v908
    %v911 = vsel %vm901, %v899, %v909
    %914 = vrot.lane.b32.xlu0 %v910, 40
    %v915 = vpop.permute.xlu0 %914
    %916 = vrot.lane.b32.xlu0 %v911, 40
    %v917 = vpop.permute.xlu0 %916
    %vm920 = vcmask 392512
    %921 = vst.msk [vmem:[#allocation8] sm:$0xff] %vm920, %v915
    %922 = vst.msk [vmem:[#allocation8 + $0x8] sm:$0xff] %vm920, %v917
    %923 = vset.pattern.permute.xlu0 6
    %924 = vperm.xlu0 %923, %v137
    %v925 = vpop.permute.xlu0 %924
    %927 = vset.pattern.permute.xlu0 6
    %928 = vperm.xlu0 %927, %v140
    %v929 = vpop.permute.xlu0 %928
    %v931 = vperm.slane %v164, 6
    %v932 = vadd.f32 %v925, %v931
    %v933 = vadd.f32 %v929, %v931
    %v934 = vmul.f32 %v932, 0.2
    %v935 = vmul.f32 %v933, 0.2
    %v936 = vmax.f32 %v932, %v934
    %v937 = vmax.f32 %v933, %v935
    %v938 = vadd.f32 %v936, %v168
    %v939 = vadd.f32 %v937, %v169
    %v940 = vsel %vm189, %v938, -inf
    %941 = vmax.xlane.f32.xlu0 %v940
    %v942 = vpop.xlane.xlu0 %941
    %v943 = vsel %vm189, %v939, -inf
    %944 = vmax.xlane.f32.xlu0 %v943
    %v945 = vpop.xlane.xlu0 %944
    %v946 = vsub.f32 %v938, %v942
    %v947 = vsub.f32 %v939, %v945
    %v948 = vmul.f32 %v946, 1.442695
    %v949 = vpow.pop %v948
    %v950 = vmul.f32 %v947, 1.442695
    %v951 = vpow.pop %v950
    %v952 = vsel %vm189, %v949, 0.0
    %953 = vadd.xlane.f32.xlu0 %v952
    %v954 = vpop.xlane.xlu0 %953
    %v955 = vsel %vm189, %v951, 0.0
    %956 = vadd.xlane.f32.xlu0 %v955
    %v957 = vpop.xlane.xlu0 %956
    %958 = vrot.lane.b32.xlu0 %v104, 80
    %v959 = vpop.permute.xlu0 %958
    %960 = vrot.lane.b32.xlu0 %v107, 80
    %v961 = vpop.permute.xlu0 %960
    %v965 = vsel %vm189, %v949, 0
    %v968 = vsel %vm189, %v951, 0
    %970 = vmatpush.msra.mxu0 0.0
    %971 = vmatpush.msra.mxu0 0.0
    %972 = vmatpush.msra.mxu0 0.0
    %973 = vmatpush.msra.mxu0 0.0
    %974 = vmatpush.msra.mxu0 0.0
    %975 = vmatpush.msra.mxu0 0.0
    %976 = vmatpush.msra.mxu0 0.0
    %977 = vmatpush.msra.mxu0 0.0
    %978 = vmatpush.msra.mxu0 0.0
    %979 = vmatpush.msra.mxu0 0.0
    %980 = vmatpush.msra.mxu0 0.0
    %981 = vmatpush.msra.mxu0 0.0
    %982 = vmatpush.msra.mxu0 0.0
    %983 = vmatpush.msra.mxu0 0.0
    %984 = vmatpush.msra.mxu0 %v961
    %985 = vmatpush.msra.mxu0 %v959
    %986 = vmatmul.f32.gmra.mxu0 %v965
    %v987 = vpop.f32.mrf.mxu0
    %v988 = vadd.f32 0.0, %v987
    %989 = vmatmul.f32.gmra.mxu0 %v968
    %v990 = vpop.f32.mrf.mxu0
    %v991 = vadd.f32 0.0, %v990
    %992 = vdwg.mxu0
    %v993 = vmax.f32 %v954, 1e-20
    %v994 = vmax.f32 %v957, 1e-20
    %v995 = vrcp.pop %v993
    %v996 = vmul.f32 %v993, %v995
    %v997 = vsub.f32 1.0, %v996
    %v998 = vmul.f32 %v995, %v997
    %v999 = vadd.f32 %v995, %v998
    %vm1000 = vweird.f32 %v993
    %vm1001 = vweird.f32 %v995
    %vm1002 = vmor %vm1000, %vm1001
    %v1003 = vsel %vm1002, %v995, %v999
    %v1004 = vand.u32 2147483647, %v993
    %vm1005 = vcmp.eq.f32.partialorder %v1004, 8.507059e+37
    %v1006 = vand.u32 %v993, 2147483648
    %v1007 = vor.u32 1.1754944e-38, %v1006
    %v1008 = vsel %vm1005, %v1007, %v1003
    %v1009 = vmul.f32 1.0, %v1008
    %v1010 = vrcp.pop %v994
    %v1011 = vmul.f32 %v994, %v1010
    %v1012 = vsub.f32 1.0, %v1011
    %v1013 = vmul.f32 %v1010, %v1012
    %v1014 = vadd.f32 %v1010, %v1013
    %vm1015 = vweird.f32 %v994
    %vm1016 = vweird.f32 %v1010
    %vm1017 = vmor %vm1015, %vm1016
    %v1018 = vsel %vm1017, %v1010, %v1014
    %v1019 = vand.u32 2147483647, %v994
    %vm1020 = vcmp.eq.f32.partialorder %v1019, 8.507059e+37
    %v1021 = vand.u32 %v994, 2147483648
    %v1022 = vor.u32 1.1754944e-38, %v1021
    %v1023 = vsel %vm1020, %v1022, %v1018
    %v1024 = vmul.f32 1.0, %v1023
    %v1025 = vmul.f32 %v988, %v1009
    %v1026 = vmul.f32 %v991, %v1024
    %vm1027 = vcmp.gt.f32.partialorder %v1025, 0.0
    %vm1028 = vcmp.gt.f32.partialorder %v1026, 0.0
    %v1029 = vmin.f32 %v1025, 0.0
    %v1030 = vmin.f32 %v1026, 0.0
    %v1031 = vmul.f32 %v1029, 1.442695
    %v1032 = vpow.pop %v1031
    %v1033 = vmul.f32 %v1030, 1.442695
    %v1034 = vpow.pop %v1033
    %v1035 = vsub.f32 %v1032, 1.0
    %v1036 = vsub.f32 %v1034, 1.0
    %v1037 = vsel %vm1027, %v1025, %v1035
    %v1038 = vsel %vm1028, %v1026, %v1036
    %1041 = vrot.lane.b32.xlu0 %v1037, 48
    %v1042 = vpop.permute.xlu0 %1041
    %1043 = vrot.lane.b32.xlu0 %v1038, 48
    %v1044 = vpop.permute.xlu0 %1043
    %vm1047 = vcmask 458112
    %1048 = vst.msk [vmem:[#allocation8] sm:$0xff] %vm1047, %v1042
    %1049 = vst.msk [vmem:[#allocation8 + $0x8] sm:$0xff] %vm1047, %v1044
    %1050 = vset.pattern.permute.xlu0 7
    %1051 = vperm.xlu0 %1050, %v137
    %v1052 = vpop.permute.xlu0 %1051
    %1054 = vset.pattern.permute.xlu0 7
    %1055 = vperm.xlu0 %1054, %v140
    %v1056 = vpop.permute.xlu0 %1055
    %v1058 = vperm.slane %v164, 7
    %v1059 = vadd.f32 %v1052, %v1058
    %v1060 = vadd.f32 %v1056, %v1058
    %v1061 = vmul.f32 %v1059, 0.2
    %v1062 = vmul.f32 %v1060, 0.2
    %v1063 = vmax.f32 %v1059, %v1061
    %v1064 = vmax.f32 %v1060, %v1062
    %v1065 = vadd.f32 %v1063, %v168
    %v1066 = vadd.f32 %v1064, %v169
    %v1067 = vsel %vm189, %v1065, -inf
    %1068 = vmax.xlane.f32.xlu0 %v1067
    %v1069 = vpop.xlane.xlu0 %1068
    %v1070 = vsel %vm189, %v1066, -inf
    %1071 = vmax.xlane.f32.xlu0 %v1070
    %v1072 = vpop.xlane.xlu0 %1071
    %v1073 = vsub.f32 %v1065, %v1069
    %v1074 = vsub.f32 %v1066, %v1072
    %v1075 = vmul.f32 %v1073, 1.442695
    %v1076 = vpow.pop %v1075
    %v1077 = vmul.f32 %v1074, 1.442695
    %v1078 = vpow.pop %v1077
    %v1079 = vsel %vm189, %v1076, 0.0
    %1080 = vadd.xlane.f32.xlu0 %v1079
    %v1081 = vpop.xlane.xlu0 %1080
    %v1082 = vsel %vm189, %v1078, 0.0
    %1083 = vadd.xlane.f32.xlu0 %v1082
    %v1084 = vpop.xlane.xlu0 %1083
    %1085 = vrot.lane.b32.xlu0 %v104, 72
    %v1086 = vpop.permute.xlu0 %1085
    %1087 = vrot.lane.b32.xlu0 %v107, 72
    %v1088 = vpop.permute.xlu0 %1087
    %v1092 = vsel %vm189, %v1076, 0
    %v1095 = vsel %vm189, %v1078, 0
    %1097 = vmatpush.msra.mxu0 0.0
    %1098 = vmatpush.msra.mxu0 0.0
    %1099 = vmatpush.msra.mxu0 0.0
    %1100 = vmatpush.msra.mxu0 0.0
    %1101 = vmatpush.msra.mxu0 0.0
    %1102 = vmatpush.msra.mxu0 0.0
    %1103 = vmatpush.msra.mxu0 0.0
    %1104 = vmatpush.msra.mxu0 0.0
    %1105 = vmatpush.msra.mxu0 0.0
    %1106 = vmatpush.msra.mxu0 0.0
    %1107 = vmatpush.msra.mxu0 0.0
    %1108 = vmatpush.msra.mxu0 0.0
    %1109 = vmatpush.msra.mxu0 0.0
    %1110 = vmatpush.msra.mxu0 0.0
    %1111 = vmatpush.msra.mxu0 %v1088
    %1112 = vmatpush.msra.mxu0 %v1086
    %1113 = vmatmul.f32.gmra.mxu0 %v1092
    %v1114 = vpop.f32.mrf.mxu0
    %v1115 = vadd.f32 0.0, %v1114
    %1116 = vmatmul.f32.gmra.mxu0 %v1095
    %v1117 = vpop.f32.mrf.mxu0
    %v1118 = vadd.f32 0.0, %v1117
    %1119 = vdwg.mxu0
    %v1120 = vmax.f32 %v1081, 1e-20
    %v1121 = vmax.f32 %v1084, 1e-20
    %v1122 = vrcp.pop %v1120
    %v1123 = vmul.f32 %v1120, %v1122
    %v1124 = vsub.f32 1.0, %v1123
    %v1125 = vmul.f32 %v1122, %v1124
    %v1126 = vadd.f32 %v1122, %v1125
    %vm1127 = vweird.f32 %v1120
    %vm1128 = vweird.f32 %v1122
    %vm1129 = vmor %vm1127, %vm1128
    %v1130 = vsel %vm1129, %v1122, %v1126
    %v1131 = vand.u32 2147483647, %v1120
    %vm1132 = vcmp.eq.f32.partialorder %v1131, 8.507059e+37
    %v1133 = vand.u32 %v1120, 2147483648
    %v1134 = vor.u32 1.1754944e-38, %v1133
    %v1135 = vsel %vm1132, %v1134, %v1130
    %v1136 = vmul.f32 1.0, %v1135
    %v1137 = vrcp.pop %v1121
    %v1138 = vmul.f32 %v1121, %v1137
    %v1139 = vsub.f32 1.0, %v1138
    %v1140 = vmul.f32 %v1137, %v1139
    %v1141 = vadd.f32 %v1137, %v1140
    %vm1142 = vweird.f32 %v1121
    %vm1143 = vweird.f32 %v1137
    %vm1144 = vmor %vm1142, %vm1143
    %v1145 = vsel %vm1144, %v1137, %v1141
    %v1146 = vand.u32 2147483647, %v1121
    %vm1147 = vcmp.eq.f32.partialorder %v1146, 8.507059e+37
    %v1148 = vand.u32 %v1121, 2147483648
    %v1149 = vor.u32 1.1754944e-38, %v1148
    %v1150 = vsel %vm1147, %v1149, %v1145
    %v1151 = vmul.f32 1.0, %v1150
    %v1152 = vmul.f32 %v1115, %v1136
    %v1153 = vmul.f32 %v1118, %v1151
    %vm1154 = vcmp.gt.f32.partialorder %v1152, 0.0
    %vm1155 = vcmp.gt.f32.partialorder %v1153, 0.0
    %v1156 = vmin.f32 %v1152, 0.0
    %v1157 = vmin.f32 %v1153, 0.0
    %v1158 = vmul.f32 %v1156, 1.442695
    %v1159 = vpow.pop %v1158
    %v1160 = vmul.f32 %v1157, 1.442695
    %v1161 = vpow.pop %v1160
    %v1162 = vsub.f32 %v1159, 1.0
    %v1163 = vsub.f32 %v1161, 1.0
    %v1164 = vsel %vm1154, %v1152, %v1162
    %v1165 = vsel %vm1155, %v1153, %v1163
    %1168 = vrot.lane.b32.xlu0 %v1164, 56
    %v1169 = vpop.permute.xlu0 %1168
    %1170 = vrot.lane.b32.xlu0 %v1165, 56
    %v1171 = vpop.permute.xlu0 %1170
    %vm1174 = vcmask 523712
    %1175 = vst.msk [vmem:[#allocation8] sm:$0xff] %vm1174, %v1169
    %1176 = vst.msk [vmem:[#allocation8 + $0x8] sm:$0xff] %vm1174, %v1171
    // Predicated region
    $region38: #{tpu_custom_call.1} parent=1 // pred_check
      _
    $region39: #{tpu_custom_call.1} parent=1 // pred_check_branch
      %1178 = sbr.rel (0) target = $region41
    $region40: #{tpu_custom_call.1} parent=1 // pred_region
      %1180 = vsyncadd [#allocation4], 0
      %s1181 = sshll.u32 [#allocation8], 4
      %s1182 = int_to_ptr.vmem [resolvable:$true] %s1181
      %s1183 = sshll.u32 %s6, 4
      %s1184 = int_to_ptr.hbm [resolvable:$true] %s1183
      %1189 = dma.vmem_to_hbm [thread:$0]  %s1182, 256, %s1184, [#allocation4], 128, 128, 8
    $region41: #{tpu_custom_call.1} parent=1 // pred_fallthru
      _
    // Predicated region
    $region42: #{tpu_custom_call.1} parent=1 // pred_check
      _
    $region43: #{tpu_custom_call.1} parent=1 // pred_check_branch
      %1191 = sbr.rel (0) target = $region45
    $region44: #{tpu_custom_call.1} parent=1 // pred_region
      %1193 = dma.done [#allocation4], 256
    $region45: #{tpu_custom_call.1} parent=1 // pred_fallthru
      _
    %1194 = vsyncpa [#allocation3], 1
    %1195 = vsyncpa [#allocation6], 1
    %1196 = vsyncpa [#allocation4], 1

</llo_original>
